<compile_context>
chip_gen: v7x
topology: tpu7x:2x2x1
jax: 0.10.0
libtpu: 0.0.40
codegen_flags: <defaults>
</compile_context>

<pallas_src>
import functools
import math

import numpy as np
import jax
import jax.numpy as jnp
from jax.experimental import pallas as pl
from jax.experimental.pallas import tpu as pltpu


# ----------------------------- glue (plain JAX) -----------------------------

def shift_dim(x, src_dim=-1, dest_dim=-1):
    """JAX port of the PyTorch shift_dim helper (permutation only)."""
    n_dims = x.ndim
    if src_dim < 0:
        src_dim = n_dims + src_dim
    if dest_dim < 0:
        dest_dim = n_dims + dest_dim
    assert 0 <= src_dim < n_dims and 0 <= dest_dim < n_dims
    dims = list(range(n_dims))
    del dims[src_dim]
    permutation = []
    ctr = 0
    for i in range(n_dims):
        if i == dest_dim:
            permutation.append(src_dim)
        else:
            permutation.append(dims[ctr])
            ctr += 1
    return jnp.transpose(x, permutation)


# ----------------------------- Pallas kernel --------------------------------

def _axial_attn_kernel(q_ref, k_ref, v_ref, o_ref):
    """One grid step: full attention for a block of BB independent rows.

    q_ref, k_ref, v_ref, o_ref: (BB, L, D) VMEM tiles.
    """
    q = q_ref[...]
    k = k_ref[...]
    v = v_ref[...]

    D = q.shape[-1]
    scale = 1.0 / float(np.sqrt(D))
    # Fold 1/sqrt(D) into q (BB*L*D multiplies instead of BB*L*L on the scores).
    qs = q * jnp.asarray(scale, dtype=q.dtype)

    # scores = q @ k^T  (batched over BB -> einsum on the MXU, f32 accumulation;
    # bf16 inputs stay bf16 on the MXU, f32 inputs run in f32).
    attn = jnp.einsum("bld,bmd->blm", qs, k,
                      preferred_element_type=jnp.float32)

    # Numerically-stable softmax over the key axis, in f32 (matches F.softmax).
    m = jnp.max(attn, axis=-1, keepdims=True)
    e = jnp.exp(attn - m)
    s = jnp.sum(e, axis=-1, keepdims=True)
    # EUP reciprocal instead of a VALU divide over the full (BB, L, L) tensor.
    p = e * pl.reciprocal(s, approx=True)

    # out = p @ v  (cast p back to v's dtype so bf16 inputs use the bf16 MXU path).
    out = jnp.einsum("blm,bmd->bld", p.astype(v.dtype), v,
                     preferred_element_type=jnp.float32)
    o_ref[...] = out.astype(o_ref.dtype)


def _vmem_limit_bytes():
    """Generation-aware VMEM limit (~3/4 of physical, capped at 112 MiB)."""
    cap = 64 * 1024 * 1024
    try:
        info = pltpu.get_tpu_info()
        cap = int(getattr(info, "vmem_capacity_bytes", cap) or cap)
    except Exception:
        pass
    return int(min(cap * 3 // 4, 112 * 1024 * 1024))


def _choose_block_b(B, L, D, itemsize, vmem_budget_bytes):
    """Pick the largest batch block that fits the VMEM budget."""
    # Per batch row: 4 io tiles x 2 pipeline buffers, plus f32 intermediates
    # (scores / exp / p and a couple of (L, D) f32 temps).
    io_bytes = 4 * 2 * L * D * itemsize
    tmp_bytes = 3 * L * L * 4 + 3 * L * D * 4
    per_b = io_bytes + tmp_bytes
    bb = max(1, vmem_budget_bytes // per_b)
    bb = min(bb, B)
    # Keep at least 2 grid steps when possible so both v7x TensorCores get work
    # and the double-buffered pipeline actually overlaps DMA with compute.
    if B >= 2:
        bb = min(bb, -(-B // 2))
    if bb >= 8:
        bb = (bb // 8) * 8
    return int(max(1, bb))


def batched_attention_pallas(q, k, v):
    """Scaled dot-product attention on (B, L, D) arrays, grid over B."""
    B, L, D = q.shape
    vmem_limit = _vmem_limit_bytes()
    # Size tiles to ~half the limit; leaves headroom for compiler scratch.
    block_b = _choose_block_b(B, L, D, q.dtype.itemsize, vmem_limit // 2)
    grid = pl.cdiv(B, block_b)

    # TODO(synk): for very long axial lengths (L >~ 2048) switch to a
    # flash-style key-tiled online-softmax accumulator instead of materializing
    # the full (block_b, L, L) score matrix (needed to fit v7x's 64 MiB VMEM).

    spec = pl.BlockSpec((block_b, L, D), lambda i: (i, 0, 0))
    return pl.pallas_call(
        _axial_attn_kernel,
        out_shape=jax.ShapeDtypeStruct((B, L, D), q.dtype),
        grid_spec=pltpu.PrefetchScalarGridSpec(
            num_scalar_prefetch=0,
            grid=(grid,),
            in_specs=[spec, spec, spec],
            out_specs=spec,
        ),
        compiler_params=pltpu.CompilerParams(
            dimension_semantics=("parallel",),
            vmem_limit_bytes=vmem_limit,
        ),
    )(q, k, v)


# ----------------------------- module wrapper --------------------------------

class AxialAttention:
    """JAX/Pallas port of the PyTorch AxialAttention module (no parameters)."""

    def __init__(self, n_dim, axial_dim):
        if axial_dim < 0:
            axial_dim = 2 + n_dim + 1 + axial_dim
        else:
            axial_dim += 2
        self.axial_dim = axial_dim

    def __call__(self, q, k, v, decode_step=None, decode_idx=None):
        # Move the axial dim to -2, flatten all leading dims.
        q = shift_dim(q, self.axial_dim, -2)
        k = shift_dim(k, self.axial_dim, -2)
        v = shift_dim(v, self.axial_dim, -2)
        old_shape = v.shape
        L, D = old_shape[-2], old_shape[-1]
        qf = q.reshape(-1, L, D)
        kf = k.reshape(-1, L, D)
        vf = v.reshape(-1, L, D)

        out = batched_attention_pallas(qf, kf, vf)

        out = out.reshape(old_shape)
        out = shift_dim(out, -2, self.axial_dim)
        return out


# ----------------------------- reference (pure JAX) ---------------------------

def _reference_axial_attention(q, k, v, axial_dim_full):
    qs = shift_dim(q, axial_dim_full, -2)
    ks = shift_dim(k, axial_dim_full, -2)
    vs = shift_dim(v, axial_dim_full, -2)
    old_shape = vs.shape
    L, D = old_shape[-2], old_shape[-1]
    qf = qs.reshape(-1, L, D)
    kf = ks.reshape(-1, L, D)
    vf = vs.reshape(-1, L, D)
    attn = jnp.einsum("bld,bmd->blm", qf, kf) / np.sqrt(D)
    attn = jax.nn.softmax(attn, axis=-1)
    out = jnp.einsum("blm,bmd->bld", attn, vf)
    out = out.reshape(old_shape)
    return shift_dim(out, -2, axial_dim_full)


# ----------------------------- main -------------------------------------------

if __name__ == "__main__":
    # AxialAttention over 2 spatial dims, attending along spatial dim 0.
    n_dim = 2
    axial_dim = 0

    # q, k, v: (batch, heads, s1, s2, head_dim)
    B, H, S1, S2, D = 2, 2, 4, 8, 32
    key = jax.random.PRNGKey(0)
    kq, kk, kv = jax.random.split(key, 3)
    q = jax.random.normal(kq, (B, H, S1, S2, D), dtype=jnp.float32)
    k = jax.random.normal(kk, (B, H, S1, S2, D), dtype=jnp.float32)
    v = jax.random.normal(kv, (B, H, S1, S2, D), dtype=jnp.float32)

    attn = AxialAttention(n_dim=n_dim, axial_dim=axial_dim)
    out = attn(q, k, v, decode_step=None, decode_idx=None)
    out = jax.block_until_ready(out)

    ref = _reference_axial_attention(q, k, v, attn.axial_dim)
    assert out.shape == q.shape, (out.shape, q.shape)
    # Tolerance loosened slightly vs. 1e-5: the softmax denominator uses the
    # EUP approximate reciprocal (pl.reciprocal(..., approx=True)).
    np.testing.assert_allclose(np.asarray(out), np.asarray(ref),
                               rtol=5e-3, atol=5e-3)

    print("KERNEL_OK")
</pallas_src>

<mosaic_0001>
module attributes {stable_mosaic.version = 11 : i64} {
  func.func @_axial_attn_kernel(%arg0: i32, %arg1: memref<16x4x32xf32, #tpu.memory_space<vmem>>, %arg2: memref<16x4x32xf32, #tpu.memory_space<vmem>>, %arg3: memref<16x4x32xf32, #tpu.memory_space<vmem>>, %arg4: memref<16x4x32xf32, #tpu.memory_space<vmem>>) attributes {dimension_semantics = [#tpu.dimension_semantics<parallel>], iteration_bounds = array<i64: 2>, scalar_prefetch = 0 : i64, scratch_operands = 0 : i64, tpu.core_type = #tpu.core_type<tc>, window_params = [{transform_indices = @transform_0, window_bounds = array<i64: 16, 4, 32>}, {transform_indices = @transform_1, window_bounds = array<i64: 16, 4, 32>}, {transform_indices = @transform_2, window_bounds = array<i64: 16, 4, 32>}, {transform_indices = @transform_3, window_bounds = array<i64: 16, 4, 32>}]} {
    %c0 = arith.constant 0 : index
    %c0_0 = arith.constant 0 : index
    %c0_1 = arith.constant 0 : index
    %0 = vector.load %arg1[%c0, %c0_0, %c0_1] : memref<16x4x32xf32, #tpu.memory_space<vmem>>, vector<16x4x32xf32>
    %c0_2 = arith.constant 0 : index
    %c0_3 = arith.constant 0 : index
    %c0_4 = arith.constant 0 : index
    %1 = vector.load %arg2[%c0_2, %c0_3, %c0_4] : memref<16x4x32xf32, #tpu.memory_space<vmem>>, vector<16x4x32xf32>
    %c0_5 = arith.constant 0 : index
    %c0_6 = arith.constant 0 : index
    %c0_7 = arith.constant 0 : index
    %2 = vector.load %arg3[%c0_5, %c0_6, %c0_7] : memref<16x4x32xf32, #tpu.memory_space<vmem>>, vector<16x4x32xf32>
    %cst = arith.constant 0.176776692 : f32
    %3 = vector.broadcast %cst : f32 to vector<16x4x32xf32>
    %4 = arith.mulf %0, %3 : vector<16x4x32xf32>
    "tpu.trace_start"() <{level = 10 : i32, message = "bld,bmd->blm"}> : () -> ()
    %cst_8 = arith.constant dense<0.000000e+00> : vector<16x4x4xf32>
    %5 = tpu.matmul %4, %1, %cst_8 {dimension_numbers = #tpu.dot_dimension_numbers<[2], [2], [1], [1], [0, 0, 0, 1, 1, 1], [0], [0]>} : vector<16x4x32xf32>, vector<16x4x32xf32>, vector<16x4x4xf32> -> vector<16x4x4xf32>
    "tpu.trace_stop"() : () -> ()
    %cst_9 = arith.constant dense<0xFF800000> : vector<16x4xf32>
    %6 = vector.multi_reduction <maximumf>, %5, %cst_9 [2] : vector<16x4x4xf32> to vector<16x4xf32>
    %7 = vector.shape_cast %6 : vector<16x4xf32> to vector<16x4x1xf32>
    %8 = vector.broadcast %7 : vector<16x4x1xf32> to vector<16x4x4xf32>
    %9 = arith.subf %5, %8 : vector<16x4x4xf32>
    %10 = math.exp %9 : vector<16x4x4xf32>
    %cst_10 = arith.constant dense<0.000000e+00> : vector<16x4xf32>
    %11 = vector.multi_reduction <add>, %10, %cst_10 [2] : vector<16x4x4xf32> to vector<16x4xf32>
    %12 = vector.shape_cast %11 : vector<16x4xf32> to vector<16x4x1xf32>
    %13 = tpu.reciprocal %12 {approx = true} : vector<16x4x1xf32> -> vector<16x4x1xf32>
    %14 = vector.broadcast %13 : vector<16x4x1xf32> to vector<16x4x4xf32>
    %15 = arith.mulf %10, %14 : vector<16x4x4xf32>
    "tpu.trace_start"() <{level = 10 : i32, message = "blm,bmd->bld"}> : () -> ()
    %cst_11 = arith.constant dense<0.000000e+00> : vector<16x4x32xf32>
    %16 = tpu.matmul %15, %2, %cst_11 {dimension_numbers = #tpu.dot_dimension_numbers<[2], [1], [1], [2], [0, 0, 0, 1, 1, 2], [0], [0]>} : vector<16x4x4xf32>, vector<16x4x32xf32>, vector<16x4x32xf32> -> vector<16x4x32xf32>
    "tpu.trace_stop"() : () -> ()
    %c0_12 = arith.constant 0 : index
    %c0_13 = arith.constant 0 : index
    %c0_14 = arith.constant 0 : index
    %17 = vector.load %arg4[%c0_12, %c0_13, %c0_14] : memref<16x4x32xf32, #tpu.memory_space<vmem>>, vector<16x4x32xf32>
    tpu.vector_store %arg4[%c0_12, %c0_13, %c0_14], %16 {strides = array<i32>} : memref<16x4x32xf32, #tpu.memory_space<vmem>>, vector<16x4x32xf32>,
    return
  }
  func.func @transform_0(%arg0: i32) -> (i32, i32, i32) {
    %c0_i32 = arith.constant 0 : i32
    %c0_i32_0 = arith.constant 0 : i32
    %c0_i32_1 = arith.constant 0 : i32
    return %arg0, %c0_i32, %c0_i32_0 : i32, i32, i32
  }
  func.func @transform_1(%arg0: i32) -> (i32, i32, i32) {
    %c0_i32 = arith.constant 0 : i32
    %c0_i32_0 = arith.constant 0 : i32
    %c0_i32_1 = arith.constant 0 : i32
    return %arg0, %c0_i32, %c0_i32_0 : i32, i32, i32
  }
  func.func @transform_2(%arg0: i32) -> (i32, i32, i32) {
    %c0_i32 = arith.constant 0 : i32
    %c0_i32_0 = arith.constant 0 : i32
    %c0_i32_1 = arith.constant 0 : i32
    return %arg0, %c0_i32, %c0_i32_0 : i32, i32, i32
  }
  func.func @transform_3(%arg0: i32) -> (i32, i32, i32) {
    %c0_i32 = arith.constant 0 : i32
    %c0_i32_0 = arith.constant 0 : i32
    %c0_i32_1 = arith.constant 0 : i32
    return %arg0, %c0_i32, %c0_i32_0 : i32, i32, i32
  }
}

</mosaic_0001>

<llo_original>
// kernel: tpu_custom_call.1
$region0: #{tpu_custom_call.1}
  #allocation0 [shape = 'u32[]', space=smem, size = 0x4, offset = 0x4, fixed_abs, tag = 'smem constant byte address 0x4 - core index']
  #allocation1 [shape = 'u32[144,128]{1,0:T(1,128)}', space=vmem, size = 0x12000, scoped, tag = 'internal scratch']
  %s0 = inlined_call_operand.hbm [shape: f32[32,4,32], index: 0, kind: input, shape index: {}]
  %s1 = inlined_call_operand.hbm [shape: f32[32,4,32], index: 1, kind: input, shape index: {}]
  %s2 = inlined_call_operand.hbm [shape: f32[32,4,32], index: 2, kind: input, shape index: {}]
  %s3 = inlined_call_operand.hbm [shape: f32[32,4,32], index: 3, kind: output, shape index: {}]
  %s4 = sld [smem:[#allocation0]]
  $region57: #{tpu_custom_call.1} parent=0
    _
  %s6 = ssub.s32 1, %s4
  %s7 = scalar_select 0, %s6, %s4
  $region1: #{tpu_custom_call.1} parent=0
    #allocation2 [shape = 'u8[65536]{0}', space=vmem, size = 0x10000, scoped, tag = 'input window, operand 0']
    #allocation3 [shape = 's32[2]{0}', space=sflag, size = 0x8, scoped, tag = 'scoped memory for tpu_custom_call.1']
    #allocation4 [shape = 's32[2]{0}', space=sflag, size = 0x8, scoped, tag = 'scoped memory for tpu_custom_call.1']
    #allocation5 [shape = 'u8[65536]{0}', space=vmem, size = 0x10000, scoped, tag = 'input window, operand 1']
    #allocation6 [shape = 's32[2]{0}', space=sflag, size = 0x8, scoped, tag = 'scoped memory for tpu_custom_call.1']
    #allocation7 [shape = 'u8[65536]{0}', space=vmem, size = 0x10000, scoped, tag = 'input window, operand 2']
    #allocation8 [shape = 'u8[65536]{0}', space=vmem, size = 0x10000, scoped, tag = 'output window, operand 0']
    %8 = vsyncpa [#allocation3], 0
    %s9 = scalar_lea.sflag [#allocation3], 1
    %10 = vsyncpa %s9, 0
    %11 = vsyncpa [#allocation6], 0
    %s12 = scalar_lea.sflag [#allocation6], 1
    %13 = vsyncpa %s12, 0
    %14 = vsyncpa [#allocation4], 0
    %s15 = scalar_lea.sflag [#allocation4], 1
    %16 = vsyncpa %s15, 0
    loop: start=0, step=1, limit=4
    $region2: #{tpu_custom_call.1} parent=1 // loop_pre_header
      _
    $region3: #{tpu_custom_call.1} parent=1 // loop_header
      %s18 = sphi 0, %s22
      %p19 = scmp.ge.s32.totalorder %s18, 4
      %s28 = sphi 0, %s30
      %s31 = sphi 0, %s28
      %s32 = sphi 0, %s31
      %s48 = sphi 0, %s32
      %s54 = sphi 0, %s56
      %s57 = sphi 0, %s54
      %s58 = sphi 0, %s57
      %s74 = sphi 0, %s58
      %s80 = sphi 0, %s82
      %s83 = sphi 0, %s80
      %s84 = sphi 0, %s83
      %s100 = sphi 0, %s84
      %s106 = sphi 0, %s108
      %s109 = sphi 0, %s106
      %s110 = sphi 0, %s109
      %s126 = sphi 0, %s110
    $region4: #{tpu_custom_call.1} parent=1 // loop_header_branch
      %21 = sbr.rel (%p19) target = $region8
    $region5: #{tpu_custom_call.1} parent=1 // loop_body
      %s23 = ssub.s32 %s18, 1
      %s24 = ssub.s32 %s18, 2
      %s25 = sadd.s32 %s18, 1
      %s26 = ssub.s32 %s18, %s25
      %p27 = scmp.eq.s32.totalorder %s26, 0
      %s29 = sadd.s32 %s28, 1
      %s30 = scalar_select %p27, %s28, %s29
      %p33 = pneg %p27
      %p34 = scmp.eq.s32.totalorder %s18, 1
      %p35 = por %p33, %p34
      %p36 = scmp.ne.s32.totalorder %s28, %s31
      %p37 = scmp.eq.s32.totalorder %s18, 0
      %p38 = por %p36, %p37
      %p39 = scmp.ne.s32.totalorder %s28, %s31
      %p40 = scmp.eq.s32.totalorder %s23, 1
      %p41 = por %p39, %p40
      %p42 = scmp.ne.s32.totalorder %s31, %s32
      %p43 = scmp.eq.s32.totalorder %s23, 0
      %p44 = por %p42, %p43
      %p45 = scmp.ne.s32.totalorder %s31, %s32
      %p46 = scmp.eq.s32.totalorder %s24, 1
      %p47 = por %p45, %p46
      %p49 = scmp.ne.s32.totalorder %s32, %s48
      %p50 = scmp.eq.s32.totalorder %s24, 0
      %p51 = por %p49, %p50
      %s52 = ssub.s32 %s18, %s25
      %p53 = scmp.eq.s32.totalorder %s52, 0
      %s55 = sadd.s32 %s54, 1
      %s56 = scalar_select %p53, %s54, %s55
      %p59 = pneg %p53
      %p60 = scmp.eq.s32.totalorder %s18, 1
      %p61 = por %p59, %p60
      %p62 = scmp.ne.s32.totalorder %s54, %s57
      %p63 = scmp.eq.s32.totalorder %s18, 0
      %p64 = por %p62, %p63
      %p65 = scmp.ne.s32.totalorder %s54, %s57
      %p66 = scmp.eq.s32.totalorder %s23, 1
      %p67 = por %p65, %p66
      %p68 = scmp.ne.s32.totalorder %s57, %s58
      %p69 = scmp.eq.s32.totalorder %s23, 0
      %p70 = por %p68, %p69
      %p71 = scmp.ne.s32.totalorder %s57, %s58
      %p72 = scmp.eq.s32.totalorder %s24, 1
      %p73 = por %p71, %p72
      %p75 = scmp.ne.s32.totalorder %s58, %s74
      %p76 = scmp.eq.s32.totalorder %s24, 0
      %p77 = por %p75, %p76
      %s78 = ssub.s32 %s18, %s25
      %p79 = scmp.eq.s32.totalorder %s78, 0
      %s81 = sadd.s32 %s80, 1
      %s82 = scalar_select %p79, %s80, %s81
      %p85 = pneg %p79
      %p86 = scmp.eq.s32.totalorder %s18, 1
      %p87 = por %p85, %p86
      %p88 = scmp.ne.s32.totalorder %s80, %s83
      %p89 = scmp.eq.s32.totalorder %s18, 0
      %p90 = por %p88, %p89
      %p91 = scmp.ne.s32.totalorder %s80, %s83
      %p92 = scmp.eq.s32.totalorder %s23, 1
      %p93 = por %p91, %p92
      %p94 = scmp.ne.s32.totalorder %s83, %s84
      %p95 = scmp.eq.s32.totalorder %s23, 0
      %p96 = por %p94, %p95
      %p97 = scmp.ne.s32.totalorder %s83, %s84
      %p98 = scmp.eq.s32.totalorder %s24, 1
      %p99 = por %p97, %p98
      %p101 = scmp.ne.s32.totalorder %s84, %s100
      %p102 = scmp.eq.s32.totalorder %s24, 0
      %p103 = por %p101, %p102
      %s104 = ssub.s32 %s18, %s25
      %p105 = scmp.eq.s32.totalorder %s104, 0
      %s107 = sadd.s32 %s106, 1
      %s108 = scalar_select %p105, %s106, %s107
      %p111 = pneg %p105
      %p112 = scmp.eq.s32.totalorder %s18, 1
      %p113 = por %p111, %p112
      %p114 = scmp.ne.s32.totalorder %s106, %s109
      %p115 = scmp.eq.s32.totalorder %s18, 0
      %p116 = por %p114, %p115
      %p117 = scmp.ne.s32.totalorder %s106, %s109
      %p118 = scmp.eq.s32.totalorder %s23, 1
      %p119 = por %p117, %p118
      %p120 = scmp.ne.s32.totalorder %s109, %s110
      %p121 = scmp.eq.s32.totalorder %s23, 0
      %p122 = por %p120, %p121
      %p123 = scmp.ne.s32.totalorder %s109, %s110
      %p124 = scmp.eq.s32.totalorder %s24, 1
      %p125 = por %p123, %p124
      %p127 = scmp.ne.s32.totalorder %s110, %s126
      %p128 = scmp.eq.s32.totalorder %s24, 0
      %p129 = por %p127, %p128
      %p130 = scmp.le.s32.totalorder 1, %s18
      %p131 = scmp.lt.s32.totalorder %s18, 3
      %p132 = pnand %p130, %p131
      %p133 = pneg %p132
      // Predicated region
      $region9: #{tpu_custom_call.1} parent=5 // pred_check
        _
      $region10: #{tpu_custom_call.1} parent=5 // pred_check_branch
        %135 = sbr.rel (%p132) target = $region12
      $region11: #{tpu_custom_call.1} parent=5 // pred_region
        %s136 = ssub.s32 %s18, 1
      $region12: #{tpu_custom_call.1} parent=5 // pred_fallthru
        _
      %p137 = scmp.lt.s32.totalorder %s18, 2
      // Predicated region
      $region13: #{tpu_custom_call.1} parent=5 // pred_check
        %p138 = pneg %p137
      $region14: #{tpu_custom_call.1} parent=5 // pred_check_branch
        %140 = sbr.rel (%p138) target = $region16
      $region15: #{tpu_custom_call.1} parent=5 // pred_region
        // Predicated region
        $region17: #{tpu_custom_call.1} parent=15 // pred_check
          %p141 = pneg %p38
        $region18: #{tpu_custom_call.1} parent=15 // pred_check_branch
          %143 = sbr.rel (%p141) target = $region20
        $region19: #{tpu_custom_call.1} parent=15 // pred_region
          %s144 = sand.u32 %s28, 1
          %s145 = scalar_lea.sflag [#allocation3], %s144
          %s146 = sand.u32 %s28, 1
          %s147 = smul.addr %s146, 64
          %s148 = scalar_lea.vmem [#allocation2], %s147
          %s149 = smul.u32 16, %s18
          %s151 = ssub.s32 1024, 1024
          %152 = vsyncadd %s145, %s151
          %s153 = smul.addr %s149, 64
          %s154 = scalar_lea.hbm %s0, %s153
          %s155 = sshll.u32 %s148, 4
          %s156 = int_to_ptr.vmem [resolvable:$true] %s155
          %161 = dma.hbm_to_vmem [thread:$0]  %s154, 1024, %s156, %s145, 64, 64, 4
        $region20: #{tpu_custom_call.1} parent=15 // pred_fallthru
          _
        // Predicated region
        $region21: #{tpu_custom_call.1} parent=15 // pred_check
          %p162 = pneg %p64
        $region22: #{tpu_custom_call.1} parent=15 // pred_check_branch
          %164 = sbr.rel (%p162) target = $region24
        $region23: #{tpu_custom_call.1} parent=15 // pred_region
          %s165 = sand.u32 %s18, 1
          %s166 = scalar_lea.sflag [#allocation6], %s165
          %s167 = sand.u32 %s54, 1
          %s168 = smul.addr %s167, 64
          %s169 = scalar_lea.vmem [#allocation5], %s168
          %s170 = smul.u32 16, %s18
          %s172 = ssub.s32 1024, 1024
          %173 = vsyncadd %s166, %s172
          %s174 = smul.addr %s170, 64
          %s175 = scalar_lea.hbm %s1, %s174
          %s176 = sshll.u32 %s169, 4
          %s177 = int_to_ptr.vmem [resolvable:$true] %s176
          %182 = dma.hbm_to_vmem [thread:$0]  %s175, 1024, %s177, %s166, 64, 64, 4
        $region24: #{tpu_custom_call.1} parent=15 // pred_fallthru
          _
        // Predicated region
        $region25: #{tpu_custom_call.1} parent=15 // pred_check
          %p183 = pneg %p90
        $region26: #{tpu_custom_call.1} parent=15 // pred_check_branch
          %185 = sbr.rel (%p183) target = $region28
        $region27: #{tpu_custom_call.1} parent=15 // pred_region
          %s186 = sand.u32 %s18, 1
          %s187 = scalar_lea.sflag [#allocation6], %s186
          %s188 = sand.u32 %s80, 1
          %s189 = smul.addr %s188, 64
          %s190 = scalar_lea.vmem [#allocation7], %s189
          %s191 = smul.u32 16, %s18
          %s193 = ssub.s32 1024, 1024
          %194 = vsyncadd %s187, %s193
          %s195 = smul.addr %s191, 64
          %s196 = scalar_lea.hbm %s2, %s195
          %s197 = sshll.u32 %s190, 4
          %s198 = int_to_ptr.vmem [resolvable:$true] %s197
          %203 = dma.hbm_to_vmem [thread:$0]  %s196, 1024, %s198, %s187, 64, 64, 4
        $region28: #{tpu_custom_call.1} parent=15 // pred_fallthru
          _
      $region16: #{tpu_custom_call.1} parent=5 // pred_fallthru
        _
      %p204 = scmp.le.s32.totalorder 1, %s18
      %p205 = scmp.lt.s32.totalorder %s18, 3
      %p206 = pnand %p204, %p205
      %p207 = pneg %p206
      // Predicated region
      $region29: #{tpu_custom_call.1} parent=5 // pred_check
        _
      $region30: #{tpu_custom_call.1} parent=5 // pred_check_branch
        %209 = sbr.rel (%p206) target = $region32
      $region31: #{tpu_custom_call.1} parent=5 // pred_region
        %s210 = ssub.s32 %s18, 1
        %s211 = sand.u32 %s31, 1
        %s212 = scalar_lea.sflag [#allocation3], %s211
        %s213 = sand.u32 %s31, 1
        %s214 = smul.addr %s213, 64
        %s215 = scalar_lea.vmem [#allocation2], %s214
        // Predicated region
        $region33: #{tpu_custom_call.1} parent=31 // pred_check
          %p216 = pneg %p44
        $region34: #{tpu_custom_call.1} parent=31 // pred_check_branch
          %218 = sbr.rel (%p216) target = $region36
        $region35: #{tpu_custom_call.1} parent=31 // pred_region
          %219 = dma.done %s212, 1024
        $region36: #{tpu_custom_call.1} parent=31 // pred_fallthru
          _
        %s220 = sand.u32 %s23, 1
        %s221 = scalar_lea.sflag [#allocation6], %s220
        %s222 = sand.u32 %s57, 1
        %s223 = smul.addr %s222, 64
        %s224 = scalar_lea.vmem [#allocation5], %s223
        // Predicated region
        $region37: #{tpu_custom_call.1} parent=31 // pred_check
          %p225 = pneg %p70
        $region38: #{tpu_custom_call.1} parent=31 // pred_check_branch
          %227 = sbr.rel (%p225) target = $region40
        $region39: #{tpu_custom_call.1} parent=31 // pred_region
          %228 = dma.done %s221, 1024
        $region40: #{tpu_custom_call.1} parent=31 // pred_fallthru
          _
        %s229 = sand.u32 %s23, 1
        %s230 = scalar_lea.sflag [#allocation6], %s229
        %s231 = sand.u32 %s83, 1
        %s232 = smul.addr %s231, 64
        %s233 = scalar_lea.vmem [#allocation7], %s232
        // Predicated region
        $region41: #{tpu_custom_call.1} parent=31 // pred_check
          %p234 = pneg %p96
        $region42: #{tpu_custom_call.1} parent=31 // pred_check_branch
          %236 = sbr.rel (%p234) target = $region44
        $region43: #{tpu_custom_call.1} parent=31 // pred_region
          %237 = dma.done %s230, 1024
        $region44: #{tpu_custom_call.1} parent=31 // pred_fallthru
          _
        %s238 = sand.u32 %s31, 1
        %s239 = scalar_lea.sflag [#allocation3], %s238
        %s240 = sand.u32 %s31, 1
        %s241 = smul.addr %s240, 64
        %s242 = scalar_lea.vmem [#allocation2], %s241
        %p243 = pneg %p44
        %p244 = pneg %p41
        %s245 = sand.u32 %s23, 1
        %s246 = scalar_lea.sflag [#allocation6], %s245
        %s247 = sand.u32 %s57, 1
        %s248 = smul.addr %s247, 64
        %s249 = scalar_lea.vmem [#allocation5], %s248
        %p250 = pneg %p70
        %p251 = pneg %p67
        %s252 = sand.u32 %s23, 1
        %s253 = scalar_lea.sflag [#allocation6], %s252
        %s254 = sand.u32 %s83, 1
        %s255 = smul.addr %s254, 64
        %s256 = scalar_lea.vmem [#allocation7], %s255
        %p257 = pneg %p96
        %p258 = pneg %p93
        %p259 = pneg %p122
        %p260 = pneg %p119
        %s261 = sand.u32 %s109, 1
        %s262 = scalar_lea.sflag [#allocation4], %s261
        %s263 = sand.u32 %s109, 1
        %s264 = smul.addr %s263, 64
        %s265 = scalar_lea.vmem [#allocation8], %s264
        %s266 = smul.u32 16, %s23
        %s267 = smul.u32 16, %s23
        %s268 = smul.u32 16, %s23
        %s269 = smul.u32 16, %s23
        %v270 = vld [vmem:[%s215] sm:$0xf]
        %v271 = vld [vmem:[%s215 + $0x4] sm:$0xf]
        %v272 = vld [vmem:[%s215 + $0x8] sm:$0xf]
        %v273 = vld [vmem:[%s215 + $0xc] sm:$0xf]
        %v274 = vld [vmem:[%s215 + $0x10] sm:$0xf]
        %v275 = vld [vmem:[%s215 + $0x14] sm:$0xf]
        %v276 = vld [vmem:[%s215 + $0x18] sm:$0xf]
        %v277 = vld [vmem:[%s215 + $0x1c] sm:$0xf]
        %v278 = vld [vmem:[%s215 + $0x20] sm:$0xf]
        %v279 = vld [vmem:[%s215 + $0x24] sm:$0xf]
        %v280 = vld [vmem:[%s215 + $0x28] sm:$0xf]
        %v281 = vld [vmem:[%s215 + $0x2c] sm:$0xf]
        %v282 = vld [vmem:[%s215 + $0x30] sm:$0xf]
        %v283 = vld [vmem:[%s215 + $0x34] sm:$0xf]
        %v284 = vld [vmem:[%s215 + $0x38] sm:$0xf]
        %v285 = vld [vmem:[%s215 + $0x3c] sm:$0xf]
        %v286 = vld [vmem:[%s224] sm:$0xf]
        %v287 = vld [vmem:[%s224 + $0x4] sm:$0xf]
        %v288 = vld [vmem:[%s224 + $0x8] sm:$0xf]
        %v289 = vld [vmem:[%s224 + $0xc] sm:$0xf]
        %v290 = vld [vmem:[%s224 + $0x10] sm:$0xf]
        %v291 = vld [vmem:[%s224 + $0x14] sm:$0xf]
        %v292 = vld [vmem:[%s224 + $0x18] sm:$0xf]
        %v293 = vld [vmem:[%s224 + $0x1c] sm:$0xf]
        %v294 = vld [vmem:[%s224 + $0x20] sm:$0xf]
        %v295 = vld [vmem:[%s224 + $0x24] sm:$0xf]
        %v296 = vld [vmem:[%s224 + $0x28] sm:$0xf]
        %v297 = vld [vmem:[%s224 + $0x2c] sm:$0xf]
        %v298 = vld [vmem:[%s224 + $0x30] sm:$0xf]
        %v299 = vld [vmem:[%s224 + $0x34] sm:$0xf]
        %v300 = vld [vmem:[%s224 + $0x38] sm:$0xf]
        %v301 = vld [vmem:[%s224 + $0x3c] sm:$0xf]
        %v302 = vld [vmem:[%s233] sm:$0xf]
        %v303 = vld [vmem:[%s233 + $0x4] sm:$0xf]
        %v304 = vld [vmem:[%s233 + $0x8] sm:$0xf]
        %v305 = vld [vmem:[%s233 + $0xc] sm:$0xf]
        %v306 = vld [vmem:[%s233 + $0x10] sm:$0xf]
        %v307 = vld [vmem:[%s233 + $0x14] sm:$0xf]
        %v308 = vld [vmem:[%s233 + $0x18] sm:$0xf]
        %v309 = vld [vmem:[%s233 + $0x1c] sm:$0xf]
        %v310 = vld [vmem:[%s233 + $0x20] sm:$0xf]
        %v311 = vld [vmem:[%s233 + $0x24] sm:$0xf]
        %v312 = vld [vmem:[%s233 + $0x28] sm:$0xf]
        %v313 = vld [vmem:[%s233 + $0x2c] sm:$0xf]
        %v314 = vld [vmem:[%s233 + $0x30] sm:$0xf]
        %v315 = vld [vmem:[%s233 + $0x34] sm:$0xf]
        %v316 = vld [vmem:[%s233 + $0x38] sm:$0xf]
        %v317 = vld [vmem:[%s233 + $0x3c] sm:$0xf]
        %v318 = vmul.f32 %v270, 0.17677669
        %v319 = vmul.f32 %v271, 0.17677669
        %v320 = vmul.f32 %v272, 0.17677669
        %v321 = vmul.f32 %v273, 0.17677669
        %v322 = vmul.f32 %v274, 0.17677669
        %v323 = vmul.f32 %v275, 0.17677669
        %v324 = vmul.f32 %v276, 0.17677669
        %v325 = vmul.f32 %v277, 0.17677669
        %v326 = vmul.f32 %v278, 0.17677669
        %v327 = vmul.f32 %v279, 0.17677669
        %v328 = vmul.f32 %v280, 0.17677669
        %v329 = vmul.f32 %v281, 0.17677669
        %v330 = vmul.f32 %v282, 0.17677669
        %v331 = vmul.f32 %v283, 0.17677669
        %v332 = vmul.f32 %v284, 0.17677669
        %v333 = vmul.f32 %v285, 0.17677669
        %vm334 = vcmask 261120
        %v336 = vsel %vm334, %v318, 0
        %v339 = vsel %vm334, %v286, 0
        %341 = vmatprep.subr.mxu0 0.0
        %342 = vmatpush1.xpose.msra.mxu0 %v339
        %343 = vmatprep.subr.mxu0 0.0
        %344 = vmatpush1.xpose.msra.mxu0 0.0
        %345 = vmatprep.subr.mxu0 0.0
        %346 = vmatpush1.xpose.msra.mxu0 0.0
        %347 = vmatprep.subr.mxu0 0.0
        %348 = vmatpush1.xpose.msra.mxu0 0.0
        %349 = vmatprep.subr.mxu0 0.0
        %350 = vmatpush1.xpose.msra.mxu0 0.0
        %351 = vmatprep.subr.mxu0 0.0
        %352 = vmatpush1.xpose.msra.mxu0 0.0
        %353 = vmatprep.subr.mxu0 0.0
        %354 = vmatpush1.xpose.msra.mxu0 0.0
        %355 = vmatprep.subr.mxu0 0.0
        %356 = vmatpush1.xpose.msra.mxu0 0.0
        %357 = vmatprep.subr.mxu0 0.0
        %358 = vmatpush1.xpose.msra.mxu0 0.0
        %359 = vmatprep.subr.mxu0 0.0
        %360 = vmatpush1.xpose.msra.mxu0 0.0
        %361 = vmatprep.subr.mxu0 0.0
        %362 = vmatpush1.xpose.msra.mxu0 0.0
        %363 = vmatprep.subr.mxu0 0.0
        %364 = vmatpush1.xpose.msra.mxu0 0.0
        %365 = vmatprep.subr.mxu0 0.0
        %366 = vmatpush1.xpose.msra.mxu0 0.0
        %367 = vmatprep.subr.mxu0 0.0
        %368 = vmatpush1.xpose.msra.mxu0 0.0
        %369 = vmatprep.subr.mxu0 0.0
        %370 = vmatpush1.xpose.msra.mxu0 0.0
        %371 = vmatprep.subr.mxu0 0.0
        %372 = vmatpush1.xpose.msra.mxu0 0.0
        %373 = vmatprep.subr.mxu0 0.0
        %374 = vmatpush1.xpose.msra.mxu0 0.0
        %375 = vmatprep.subr.mxu0 0.0
        %376 = vmatpush1.xpose.msra.mxu0 0.0
        %377 = vmatprep.subr.mxu0 0.0
        %378 = vmatpush1.xpose.msra.mxu0 0.0
        %379 = vmatprep.subr.mxu0 0.0
        %380 = vmatpush1.xpose.msra.mxu0 0.0
        %381 = vmatprep.subr.mxu0 0.0
        %382 = vmatpush1.xpose.msra.mxu0 0.0
        %383 = vmatprep.subr.mxu0 0.0
        %384 = vmatpush1.xpose.msra.mxu0 0.0
        %385 = vmatprep.subr.mxu0 0.0
        %386 = vmatpush1.xpose.msra.mxu0 0.0
        %387 = vmatprep.subr.mxu0 0.0
        %388 = vmatpush1.xpose.msra.mxu0 0.0
        %389 = vmatprep.subr.mxu0 0.0
        %390 = vmatpush1.xpose.msra.mxu0 0.0
        %391 = vmatprep.subr.mxu0 0.0
        %392 = vmatpush1.xpose.msra.mxu0 0.0
        %393 = vmatprep.subr.mxu0 0.0
        %394 = vmatpush1.xpose.msra.mxu0 0.0
        %395 = vmatprep.subr.mxu0 0.0
        %396 = vmatpush1.xpose.msra.mxu0 0.0
        %397 = vmatprep.subr.mxu0 0.0
        %398 = vmatpush1.xpose.msra.mxu0 0.0
        %399 = vmatprep.subr.mxu0 0.0
        %400 = vmatpush1.xpose.msra.mxu0 0.0
        %401 = vmatprep.subr.mxu0 0.0
        %402 = vmatpush1.xpose.msra.mxu0 0.0
        %403 = vmatprep.subr.mxu0 0.0
        %404 = vmatpush1.xpose.msra.mxu0 0.0
        %405 = vmatprep.mubr.f32.mxu0 0.0
        %406 = vmatmul.mubr.f32.gmra.mrb[0].mxu0 %v336
        %v407 = vpop.f32.mrb[0].mxu0
        %v408 = vadd.f32 0.0, %v407
        %v409 = vpop.f32.mrb[0].mxu0
        %410 = vdwg.mxu0
        %v412 = vsel %vm334, %v319, 0
        %v415 = vsel %vm334, %v287, 0
        %417 = vmatprep.subr.mxu0 0.0
        %418 = vmatpush1.xpose.msra.mxu0 %v415
        %419 = vmatprep.subr.mxu0 0.0
        %420 = vmatpush1.xpose.msra.mxu0 0.0
        %421 = vmatprep.subr.mxu0 0.0
        %422 = vmatpush1.xpose.msra.mxu0 0.0
        %423 = vmatprep.subr.mxu0 0.0
        %424 = vmatpush1.xpose.msra.mxu0 0.0
        %425 = vmatprep.subr.mxu0 0.0
        %426 = vmatpush1.xpose.msra.mxu0 0.0
        %427 = vmatprep.subr.mxu0 0.0
        %428 = vmatpush1.xpose.msra.mxu0 0.0
        %429 = vmatprep.subr.mxu0 0.0
        %430 = vmatpush1.xpose.msra.mxu0 0.0
        %431 = vmatprep.subr.mxu0 0.0
        %432 = vmatpush1.xpose.msra.mxu0 0.0
        %433 = vmatprep.subr.mxu0 0.0
        %434 = vmatpush1.xpose.msra.mxu0 0.0
        %435 = vmatprep.subr.mxu0 0.0
        %436 = vmatpush1.xpose.msra.mxu0 0.0
        %437 = vmatprep.subr.mxu0 0.0
        %438 = vmatpush1.xpose.msra.mxu0 0.0
        %439 = vmatprep.subr.mxu0 0.0
        %440 = vmatpush1.xpose.msra.mxu0 0.0
        %441 = vmatprep.subr.mxu0 0.0
        %442 = vmatpush1.xpose.msra.mxu0 0.0
        %443 = vmatprep.subr.mxu0 0.0
        %444 = vmatpush1.xpose.msra.mxu0 0.0
        %445 = vmatprep.subr.mxu0 0.0
        %446 = vmatpush1.xpose.msra.mxu0 0.0
        %447 = vmatprep.subr.mxu0 0.0
        %448 = vmatpush1.xpose.msra.mxu0 0.0
        %449 = vmatprep.subr.mxu0 0.0
        %450 = vmatpush1.xpose.msra.mxu0 0.0
        %451 = vmatprep.subr.mxu0 0.0
        %452 = vmatpush1.xpose.msra.mxu0 0.0
        %453 = vmatprep.subr.mxu0 0.0
        %454 = vmatpush1.xpose.msra.mxu0 0.0
        %455 = vmatprep.subr.mxu0 0.0
        %456 = vmatpush1.xpose.msra.mxu0 0.0
        %457 = vmatprep.subr.mxu0 0.0
        %458 = vmatpush1.xpose.msra.mxu0 0.0
        %459 = vmatprep.subr.mxu0 0.0
        %460 = vmatpush1.xpose.msra.mxu0 0.0
        %461 = vmatprep.subr.mxu0 0.0
        %462 = vmatpush1.xpose.msra.mxu0 0.0
        %463 = vmatprep.subr.mxu0 0.0
        %464 = vmatpush1.xpose.msra.mxu0 0.0
        %465 = vmatprep.subr.mxu0 0.0
        %466 = vmatpush1.xpose.msra.mxu0 0.0
        %467 = vmatprep.subr.mxu0 0.0
        %468 = vmatpush1.xpose.msra.mxu0 0.0
        %469 = vmatprep.subr.mxu0 0.0
        %470 = vmatpush1.xpose.msra.mxu0 0.0
        %471 = vmatprep.subr.mxu0 0.0
        %472 = vmatpush1.xpose.msra.mxu0 0.0
        %473 = vmatprep.subr.mxu0 0.0
        %474 = vmatpush1.xpose.msra.mxu0 0.0
        %475 = vmatprep.subr.mxu0 0.0
        %476 = vmatpush1.xpose.msra.mxu0 0.0
        %477 = vmatprep.subr.mxu0 0.0
        %478 = vmatpush1.xpose.msra.mxu0 0.0
        %479 = vmatprep.subr.mxu0 0.0
        %480 = vmatpush1.xpose.msra.mxu0 0.0
        %481 = vmatprep.mubr.f32.mxu0 0.0
        %482 = vmatmul.mubr.f32.gmra.mrb[0].mxu0 %v412
        %v483 = vpop.f32.mrb[0].mxu0
        %v484 = vadd.f32 0.0, %v483
        %v485 = vpop.f32.mrb[0].mxu0
        %486 = vdwg.mxu0
        %v488 = vsel %vm334, %v320, 0
        %v491 = vsel %vm334, %v288, 0
        %493 = vmatprep.subr.mxu0 0.0
        %494 = vmatpush1.xpose.msra.mxu0 %v491
        %495 = vmatprep.subr.mxu0 0.0
        %496 = vmatpush1.xpose.msra.mxu0 0.0
        %497 = vmatprep.subr.mxu0 0.0
        %498 = vmatpush1.xpose.msra.mxu0 0.0
        %499 = vmatprep.subr.mxu0 0.0
        %500 = vmatpush1.xpose.msra.mxu0 0.0
        %501 = vmatprep.subr.mxu0 0.0
        %502 = vmatpush1.xpose.msra.mxu0 0.0
        %503 = vmatprep.subr.mxu0 0.0
        %504 = vmatpush1.xpose.msra.mxu0 0.0
        %505 = vmatprep.subr.mxu0 0.0
        %506 = vmatpush1.xpose.msra.mxu0 0.0
        %507 = vmatprep.subr.mxu0 0.0
        %508 = vmatpush1.xpose.msra.mxu0 0.0
        %509 = vmatprep.subr.mxu0 0.0
        %510 = vmatpush1.xpose.msra.mxu0 0.0
        %511 = vmatprep.subr.mxu0 0.0
        %512 = vmatpush1.xpose.msra.mxu0 0.0
        %513 = vmatprep.subr.mxu0 0.0
        %514 = vmatpush1.xpose.msra.mxu0 0.0
        %515 = vmatprep.subr.mxu0 0.0
        %516 = vmatpush1.xpose.msra.mxu0 0.0
        %517 = vmatprep.subr.mxu0 0.0
        %518 = vmatpush1.xpose.msra.mxu0 0.0
        %519 = vmatprep.subr.mxu0 0.0
        %520 = vmatpush1.xpose.msra.mxu0 0.0
        %521 = vmatprep.subr.mxu0 0.0
        %522 = vmatpush1.xpose.msra.mxu0 0.0
        %523 = vmatprep.subr.mxu0 0.0
        %524 = vmatpush1.xpose.msra.mxu0 0.0
        %525 = vmatprep.subr.mxu0 0.0
        %526 = vmatpush1.xpose.msra.mxu0 0.0
        %527 = vmatprep.subr.mxu0 0.0
        %528 = vmatpush1.xpose.msra.mxu0 0.0
        %529 = vmatprep.subr.mxu0 0.0
        %530 = vmatpush1.xpose.msra.mxu0 0.0
        %531 = vmatprep.subr.mxu0 0.0
        %532 = vmatpush1.xpose.msra.mxu0 0.0
        %533 = vmatprep.subr.mxu0 0.0
        %534 = vmatpush1.xpose.msra.mxu0 0.0
        %535 = vmatprep.subr.mxu0 0.0
        %536 = vmatpush1.xpose.msra.mxu0 0.0
        %537 = vmatprep.subr.mxu0 0.0
        %538 = vmatpush1.xpose.msra.mxu0 0.0
        %539 = vmatprep.subr.mxu0 0.0
        %540 = vmatpush1.xpose.msra.mxu0 0.0
        %541 = vmatprep.subr.mxu0 0.0
        %542 = vmatpush1.xpose.msra.mxu0 0.0
        %543 = vmatprep.subr.mxu0 0.0
        %544 = vmatpush1.xpose.msra.mxu0 0.0
        %545 = vmatprep.subr.mxu0 0.0
        %546 = vmatpush1.xpose.msra.mxu0 0.0
        %547 = vmatprep.subr.mxu0 0.0
        %548 = vmatpush1.xpose.msra.mxu0 0.0
        %549 = vmatprep.subr.mxu0 0.0
        %550 = vmatpush1.xpose.msra.mxu0 0.0
        %551 = vmatprep.subr.mxu0 0.0
        %552 = vmatpush1.xpose.msra.mxu0 0.0
        %553 = vmatprep.subr.mxu0 0.0
        %554 = vmatpush1.xpose.msra.mxu0 0.0
        %555 = vmatprep.subr.mxu0 0.0
        %556 = vmatpush1.xpose.msra.mxu0 0.0
        %557 = vmatprep.mubr.f32.mxu0 0.0
        %558 = vmatmul.mubr.f32.gmra.mrb[0].mxu0 %v488
        %v559 = vpop.f32.mrb[0].mxu0
        %v560 = vadd.f32 0.0, %v559
        %v561 = vpop.f32.mrb[0].mxu0
        %562 = vdwg.mxu0
        %v564 = vsel %vm334, %v321, 0
        %v567 = vsel %vm334, %v289, 0
        %569 = vmatprep.subr.mxu0 0.0
        %570 = vmatpush1.xpose.msra.mxu0 %v567
        %571 = vmatprep.subr.mxu0 0.0
        %572 = vmatpush1.xpose.msra.mxu0 0.0
        %573 = vmatprep.subr.mxu0 0.0
        %574 = vmatpush1.xpose.msra.mxu0 0.0
        %575 = vmatprep.subr.mxu0 0.0
        %576 = vmatpush1.xpose.msra.mxu0 0.0
        %577 = vmatprep.subr.mxu0 0.0
        %578 = vmatpush1.xpose.msra.mxu0 0.0
        %579 = vmatprep.subr.mxu0 0.0
        %580 = vmatpush1.xpose.msra.mxu0 0.0
        %581 = vmatprep.subr.mxu0 0.0
        %582 = vmatpush1.xpose.msra.mxu0 0.0
        %583 = vmatprep.subr.mxu0 0.0
        %584 = vmatpush1.xpose.msra.mxu0 0.0
        %585 = vmatprep.subr.mxu0 0.0
        %586 = vmatpush1.xpose.msra.mxu0 0.0
        %587 = vmatprep.subr.mxu0 0.0
        %588 = vmatpush1.xpose.msra.mxu0 0.0
        %589 = vmatprep.subr.mxu0 0.0
        %590 = vmatpush1.xpose.msra.mxu0 0.0
        %591 = vmatprep.subr.mxu0 0.0
        %592 = vmatpush1.xpose.msra.mxu0 0.0
        %593 = vmatprep.subr.mxu0 0.0
        %594 = vmatpush1.xpose.msra.mxu0 0.0
        %595 = vmatprep.subr.mxu0 0.0
        %596 = vmatpush1.xpose.msra.mxu0 0.0
        %597 = vmatprep.subr.mxu0 0.0
        %598 = vmatpush1.xpose.msra.mxu0 0.0
        %599 = vmatprep.subr.mxu0 0.0
        %600 = vmatpush1.xpose.msra.mxu0 0.0
        %601 = vmatprep.subr.mxu0 0.0
        %602 = vmatpush1.xpose.msra.mxu0 0.0
        %603 = vmatprep.subr.mxu0 0.0
        %604 = vmatpush1.xpose.msra.mxu0 0.0
        %605 = vmatprep.subr.mxu0 0.0
        %606 = vmatpush1.xpose.msra.mxu0 0.0
        %607 = vmatprep.subr.mxu0 0.0
        %608 = vmatpush1.xpose.msra.mxu0 0.0
        %609 = vmatprep.subr.mxu0 0.0
        %610 = vmatpush1.xpose.msra.mxu0 0.0
        %611 = vmatprep.subr.mxu0 0.0
        %612 = vmatpush1.xpose.msra.mxu0 0.0
        %613 = vmatprep.subr.mxu0 0.0
        %614 = vmatpush1.xpose.msra.mxu0 0.0
        %615 = vmatprep.subr.mxu0 0.0
        %616 = vmatpush1.xpose.msra.mxu0 0.0
        %617 = vmatprep.subr.mxu0 0.0
        %618 = vmatpush1.xpose.msra.mxu0 0.0
        %619 = vmatprep.subr.mxu0 0.0
        %620 = vmatpush1.xpose.msra.mxu0 0.0
        %621 = vmatprep.subr.mxu0 0.0
        %622 = vmatpush1.xpose.msra.mxu0 0.0
        %623 = vmatprep.subr.mxu0 0.0
        %624 = vmatpush1.xpose.msra.mxu0 0.0
        %625 = vmatprep.subr.mxu0 0.0
        %626 = vmatpush1.xpose.msra.mxu0 0.0
        %627 = vmatprep.subr.mxu0 0.0
        %628 = vmatpush1.xpose.msra.mxu0 0.0
        %629 = vmatprep.subr.mxu0 0.0
        %630 = vmatpush1.xpose.msra.mxu0 0.0
        %631 = vmatprep.subr.mxu0 0.0
        %632 = vmatpush1.xpose.msra.mxu0 0.0
        %633 = vmatprep.mubr.f32.mxu0 0.0
        %634 = vmatmul.mubr.f32.gmra.mrb[0].mxu0 %v564
        %v635 = vpop.f32.mrb[0].mxu0
        %v636 = vadd.f32 0.0, %v635
        %v637 = vpop.f32.mrb[0].mxu0
        %638 = vdwg.mxu0
        %v640 = vsel %vm334, %v322, 0
        %v643 = vsel %vm334, %v290, 0
        %645 = vmatprep.subr.mxu0 0.0
        %646 = vmatpush1.xpose.msra.mxu0 %v643
        %647 = vmatprep.subr.mxu0 0.0
        %648 = vmatpush1.xpose.msra.mxu0 0.0
        %649 = vmatprep.subr.mxu0 0.0
        %650 = vmatpush1.xpose.msra.mxu0 0.0
        %651 = vmatprep.subr.mxu0 0.0
        %652 = vmatpush1.xpose.msra.mxu0 0.0
        %653 = vmatprep.subr.mxu0 0.0
        %654 = vmatpush1.xpose.msra.mxu0 0.0
        %655 = vmatprep.subr.mxu0 0.0
        %656 = vmatpush1.xpose.msra.mxu0 0.0
        %657 = vmatprep.subr.mxu0 0.0
        %658 = vmatpush1.xpose.msra.mxu0 0.0
        %659 = vmatprep.subr.mxu0 0.0
        %660 = vmatpush1.xpose.msra.mxu0 0.0
        %661 = vmatprep.subr.mxu0 0.0
        %662 = vmatpush1.xpose.msra.mxu0 0.0
        %663 = vmatprep.subr.mxu0 0.0
        %664 = vmatpush1.xpose.msra.mxu0 0.0
        %665 = vmatprep.subr.mxu0 0.0
        %666 = vmatpush1.xpose.msra.mxu0 0.0
        %667 = vmatprep.subr.mxu0 0.0
        %668 = vmatpush1.xpose.msra.mxu0 0.0
        %669 = vmatprep.subr.mxu0 0.0
        %670 = vmatpush1.xpose.msra.mxu0 0.0
        %671 = vmatprep.subr.mxu0 0.0
        %672 = vmatpush1.xpose.msra.mxu0 0.0
        %673 = vmatprep.subr.mxu0 0.0
        %674 = vmatpush1.xpose.msra.mxu0 0.0
        %675 = vmatprep.subr.mxu0 0.0
        %676 = vmatpush1.xpose.msra.mxu0 0.0
        %677 = vmatprep.subr.mxu0 0.0
        %678 = vmatpush1.xpose.msra.mxu0 0.0
        %679 = vmatprep.subr.mxu0 0.0
        %680 = vmatpush1.xpose.msra.mxu0 0.0
        %681 = vmatprep.subr.mxu0 0.0
        %682 = vmatpush1.xpose.msra.mxu0 0.0
        %683 = vmatprep.subr.mxu0 0.0
        %684 = vmatpush1.xpose.msra.mxu0 0.0
        %685 = vmatprep.subr.mxu0 0.0
        %686 = vmatpush1.xpose.msra.mxu0 0.0
        %687 = vmatprep.subr.mxu0 0.0
        %688 = vmatpush1.xpose.msra.mxu0 0.0
        %689 = vmatprep.subr.mxu0 0.0
        %690 = vmatpush1.xpose.msra.mxu0 0.0
        %691 = vmatprep.subr.mxu0 0.0
        %692 = vmatpush1.xpose.msra.mxu0 0.0
        %693 = vmatprep.subr.mxu0 0.0
        %694 = vmatpush1.xpose.msra.mxu0 0.0
        %695 = vmatprep.subr.mxu0 0.0
        %696 = vmatpush1.xpose.msra.mxu0 0.0
        %697 = vmatprep.subr.mxu0 0.0
        %698 = vmatpush1.xpose.msra.mxu0 0.0
        %699 = vmatprep.subr.mxu0 0.0
        %700 = vmatpush1.xpose.msra.mxu0 0.0
        %701 = vmatprep.subr.mxu0 0.0
        %702 = vmatpush1.xpose.msra.mxu0 0.0
        %703 = vmatprep.subr.mxu0 0.0
        %704 = vmatpush1.xpose.msra.mxu0 0.0
        %705 = vmatprep.subr.mxu0 0.0
        %706 = vmatpush1.xpose.msra.mxu0 0.0
        %707 = vmatprep.subr.mxu0 0.0
        %708 = vmatpush1.xpose.msra.mxu0 0.0
        %709 = vmatprep.mubr.f32.mxu0 0.0
        %710 = vmatmul.mubr.f32.gmra.mrb[0].mxu0 %v640
        %v711 = vpop.f32.mrb[0].mxu0
        %v712 = vadd.f32 0.0, %v711
        %v713 = vpop.f32.mrb[0].mxu0
        %714 = vdwg.mxu0
        %v716 = vsel %vm334, %v323, 0
        %v719 = vsel %vm334, %v291, 0
        %721 = vmatprep.subr.mxu0 0.0
        %722 = vmatpush1.xpose.msra.mxu0 %v719
        %723 = vmatprep.subr.mxu0 0.0
        %724 = vmatpush1.xpose.msra.mxu0 0.0
        %725 = vmatprep.subr.mxu0 0.0
        %726 = vmatpush1.xpose.msra.mxu0 0.0
        %727 = vmatprep.subr.mxu0 0.0
        %728 = vmatpush1.xpose.msra.mxu0 0.0
        %729 = vmatprep.subr.mxu0 0.0
        %730 = vmatpush1.xpose.msra.mxu0 0.0
        %731 = vmatprep.subr.mxu0 0.0
        %732 = vmatpush1.xpose.msra.mxu0 0.0
        %733 = vmatprep.subr.mxu0 0.0
        %734 = vmatpush1.xpose.msra.mxu0 0.0
        %735 = vmatprep.subr.mxu0 0.0
        %736 = vmatpush1.xpose.msra.mxu0 0.0
        %737 = vmatprep.subr.mxu0 0.0
        %738 = vmatpush1.xpose.msra.mxu0 0.0
        %739 = vmatprep.subr.mxu0 0.0
        %740 = vmatpush1.xpose.msra.mxu0 0.0
        %741 = vmatprep.subr.mxu0 0.0
        %742 = vmatpush1.xpose.msra.mxu0 0.0
        %743 = vmatprep.subr.mxu0 0.0
        %744 = vmatpush1.xpose.msra.mxu0 0.0
        %745 = vmatprep.subr.mxu0 0.0
        %746 = vmatpush1.xpose.msra.mxu0 0.0
        %747 = vmatprep.subr.mxu0 0.0
        %748 = vmatpush1.xpose.msra.mxu0 0.0
        %749 = vmatprep.subr.mxu0 0.0
        %750 = vmatpush1.xpose.msra.mxu0 0.0
        %751 = vmatprep.subr.mxu0 0.0
        %752 = vmatpush1.xpose.msra.mxu0 0.0
        %753 = vmatprep.subr.mxu0 0.0
        %754 = vmatpush1.xpose.msra.mxu0 0.0
        %755 = vmatprep.subr.mxu0 0.0
        %756 = vmatpush1.xpose.msra.mxu0 0.0
        %757 = vmatprep.subr.mxu0 0.0
        %758 = vmatpush1.xpose.msra.mxu0 0.0
        %759 = vmatprep.subr.mxu0 0.0
        %760 = vmatpush1.xpose.msra.mxu0 0.0
        %761 = vmatprep.subr.mxu0 0.0
        %762 = vmatpush1.xpose.msra.mxu0 0.0
        %763 = vmatprep.subr.mxu0 0.0
        %764 = vmatpush1.xpose.msra.mxu0 0.0
        %765 = vmatprep.subr.mxu0 0.0
        %766 = vmatpush1.xpose.msra.mxu0 0.0
        %767 = vmatprep.subr.mxu0 0.0
        %768 = vmatpush1.xpose.msra.mxu0 0.0
        %769 = vmatprep.subr.mxu0 0.0
        %770 = vmatpush1.xpose.msra.mxu0 0.0
        %771 = vmatprep.subr.mxu0 0.0
        %772 = vmatpush1.xpose.msra.mxu0 0.0
        %773 = vmatprep.subr.mxu0 0.0
        %774 = vmatpush1.xpose.msra.mxu0 0.0
        %775 = vmatprep.subr.mxu0 0.0
        %776 = vmatpush1.xpose.msra.mxu0 0.0
        %777 = vmatprep.subr.mxu0 0.0
        %778 = vmatpush1.xpose.msra.mxu0 0.0
        %779 = vmatprep.subr.mxu0 0.0
        %780 = vmatpush1.xpose.msra.mxu0 0.0
        %781 = vmatprep.subr.mxu0 0.0
        %782 = vmatpush1.xpose.msra.mxu0 0.0
        %783 = vmatprep.subr.mxu0 0.0
        %784 = vmatpush1.xpose.msra.mxu0 0.0
        %785 = vmatprep.mubr.f32.mxu0 0.0
        %786 = vmatmul.mubr.f32.gmra.mrb[0].mxu0 %v716
        %v787 = vpop.f32.mrb[0].mxu0
        %v788 = vadd.f32 0.0, %v787
        %v789 = vpop.f32.mrb[0].mxu0
        %790 = vdwg.mxu0
        %v792 = vsel %vm334, %v324, 0
        %v795 = vsel %vm334, %v292, 0
        %797 = vmatprep.subr.mxu0 0.0
        %798 = vmatpush1.xpose.msra.mxu0 %v795
        %799 = vmatprep.subr.mxu0 0.0
        %800 = vmatpush1.xpose.msra.mxu0 0.0
        %801 = vmatprep.subr.mxu0 0.0
        %802 = vmatpush1.xpose.msra.mxu0 0.0
        %803 = vmatprep.subr.mxu0 0.0
        %804 = vmatpush1.xpose.msra.mxu0 0.0
        %805 = vmatprep.subr.mxu0 0.0
        %806 = vmatpush1.xpose.msra.mxu0 0.0
        %807 = vmatprep.subr.mxu0 0.0
        %808 = vmatpush1.xpose.msra.mxu0 0.0
        %809 = vmatprep.subr.mxu0 0.0
        %810 = vmatpush1.xpose.msra.mxu0 0.0
        %811 = vmatprep.subr.mxu0 0.0
        %812 = vmatpush1.xpose.msra.mxu0 0.0
        %813 = vmatprep.subr.mxu0 0.0
        %814 = vmatpush1.xpose.msra.mxu0 0.0
        %815 = vmatprep.subr.mxu0 0.0
        %816 = vmatpush1.xpose.msra.mxu0 0.0
        %817 = vmatprep.subr.mxu0 0.0
        %818 = vmatpush1.xpose.msra.mxu0 0.0
        %819 = vmatprep.subr.mxu0 0.0
        %820 = vmatpush1.xpose.msra.mxu0 0.0
        %821 = vmatprep.subr.mxu0 0.0
        %822 = vmatpush1.xpose.msra.mxu0 0.0
        %823 = vmatprep.subr.mxu0 0.0
        %824 = vmatpush1.xpose.msra.mxu0 0.0
        %825 = vmatprep.subr.mxu0 0.0
        %826 = vmatpush1.xpose.msra.mxu0 0.0
        %827 = vmatprep.subr.mxu0 0.0
        %828 = vmatpush1.xpose.msra.mxu0 0.0
        %829 = vmatprep.subr.mxu0 0.0
        %830 = vmatpush1.xpose.msra.mxu0 0.0
        %831 = vmatprep.subr.mxu0 0.0
        %832 = vmatpush1.xpose.msra.mxu0 0.0
        %833 = vmatprep.subr.mxu0 0.0
        %834 = vmatpush1.xpose.msra.mxu0 0.0
        %835 = vmatprep.subr.mxu0 0.0
        %836 = vmatpush1.xpose.msra.mxu0 0.0
        %837 = vmatprep.subr.mxu0 0.0
        %838 = vmatpush1.xpose.msra.mxu0 0.0
        %839 = vmatprep.subr.mxu0 0.0
        %840 = vmatpush1.xpose.msra.mxu0 0.0
        %841 = vmatprep.subr.mxu0 0.0
        %842 = vmatpush1.xpose.msra.mxu0 0.0
        %843 = vmatprep.subr.mxu0 0.0
        %844 = vmatpush1.xpose.msra.mxu0 0.0
        %845 = vmatprep.subr.mxu0 0.0
        %846 = vmatpush1.xpose.msra.mxu0 0.0
        %847 = vmatprep.subr.mxu0 0.0
        %848 = vmatpush1.xpose.msra.mxu0 0.0
        %849 = vmatprep.subr.mxu0 0.0
        %850 = vmatpush1.xpose.msra.mxu0 0.0
        %851 = vmatprep.subr.mxu0 0.0
        %852 = vmatpush1.xpose.msra.mxu0 0.0
        %853 = vmatprep.subr.mxu0 0.0
        %854 = vmatpush1.xpose.msra.mxu0 0.0
        %855 = vmatprep.subr.mxu0 0.0
        %856 = vmatpush1.xpose.msra.mxu0 0.0
        %857 = vmatprep.subr.mxu0 0.0
        %858 = vmatpush1.xpose.msra.mxu0 0.0
        %859 = vmatprep.subr.mxu0 0.0
        %860 = vmatpush1.xpose.msra.mxu0 0.0
        %861 = vmatprep.mubr.f32.mxu0 0.0
        %862 = vmatmul.mubr.f32.gmra.mrb[0].mxu0 %v792
        %v863 = vpop.f32.mrb[0].mxu0
        %v864 = vadd.f32 0.0, %v863
        %v865 = vpop.f32.mrb[0].mxu0
        %866 = vdwg.mxu0
        %v868 = vsel %vm334, %v325, 0
        %v871 = vsel %vm334, %v293, 0
        %873 = vmatprep.subr.mxu0 0.0
        %874 = vmatpush1.xpose.msra.mxu0 %v871
        %875 = vmatprep.subr.mxu0 0.0
        %876 = vmatpush1.xpose.msra.mxu0 0.0
        %877 = vmatprep.subr.mxu0 0.0
        %878 = vmatpush1.xpose.msra.mxu0 0.0
        %879 = vmatprep.subr.mxu0 0.0
        %880 = vmatpush1.xpose.msra.mxu0 0.0
        %881 = vmatprep.subr.mxu0 0.0
        %882 = vmatpush1.xpose.msra.mxu0 0.0
        %883 = vmatprep.subr.mxu0 0.0
        %884 = vmatpush1.xpose.msra.mxu0 0.0
        %885 = vmatprep.subr.mxu0 0.0
        %886 = vmatpush1.xpose.msra.mxu0 0.0
        %887 = vmatprep.subr.mxu0 0.0
        %888 = vmatpush1.xpose.msra.mxu0 0.0
        %889 = vmatprep.subr.mxu0 0.0
        %890 = vmatpush1.xpose.msra.mxu0 0.0
        %891 = vmatprep.subr.mxu0 0.0
        %892 = vmatpush1.xpose.msra.mxu0 0.0
        %893 = vmatprep.subr.mxu0 0.0
        %894 = vmatpush1.xpose.msra.mxu0 0.0
        %895 = vmatprep.subr.mxu0 0.0
        %896 = vmatpush1.xpose.msra.mxu0 0.0
        %897 = vmatprep.subr.mxu0 0.0
        %898 = vmatpush1.xpose.msra.mxu0 0.0
        %899 = vmatprep.subr.mxu0 0.0
        %900 = vmatpush1.xpose.msra.mxu0 0.0
        %901 = vmatprep.subr.mxu0 0.0
        %902 = vmatpush1.xpose.msra.mxu0 0.0
        %903 = vmatprep.subr.mxu0 0.0
        %904 = vmatpush1.xpose.msra.mxu0 0.0
        %905 = vmatprep.subr.mxu0 0.0
        %906 = vmatpush1.xpose.msra.mxu0 0.0
        %907 = vmatprep.subr.mxu0 0.0
        %908 = vmatpush1.xpose.msra.mxu0 0.0
        %909 = vmatprep.subr.mxu0 0.0
        %910 = vmatpush1.xpose.msra.mxu0 0.0
        %911 = vmatprep.subr.mxu0 0.0
        %912 = vmatpush1.xpose.msra.mxu0 0.0
        %913 = vmatprep.subr.mxu0 0.0
        %914 = vmatpush1.xpose.msra.mxu0 0.0
        %915 = vmatprep.subr.mxu0 0.0
        %916 = vmatpush1.xpose.msra.mxu0 0.0
        %917 = vmatprep.subr.mxu0 0.0
        %918 = vmatpush1.xpose.msra.mxu0 0.0
        %919 = vmatprep.subr.mxu0 0.0
        %920 = vmatpush1.xpose.msra.mxu0 0.0
        %921 = vmatprep.subr.mxu0 0.0
        %922 = vmatpush1.xpose.msra.mxu0 0.0
        %923 = vmatprep.subr.mxu0 0.0
        %924 = vmatpush1.xpose.msra.mxu0 0.0
        %925 = vmatprep.subr.mxu0 0.0
        %926 = vmatpush1.xpose.msra.mxu0 0.0
        %927 = vmatprep.subr.mxu0 0.0
        %928 = vmatpush1.xpose.msra.mxu0 0.0
        %929 = vmatprep.subr.mxu0 0.0
        %930 = vmatpush1.xpose.msra.mxu0 0.0
        %931 = vmatprep.subr.mxu0 0.0
        %932 = vmatpush1.xpose.msra.mxu0 0.0
        %933 = vmatprep.subr.mxu0 0.0
        %934 = vmatpush1.xpose.msra.mxu0 0.0
        %935 = vmatprep.subr.mxu0 0.0
        %936 = vmatpush1.xpose.msra.mxu0 0.0
        %937 = vmatprep.mubr.f32.mxu0 0.0
        %938 = vmatmul.mubr.f32.gmra.mrb[0].mxu0 %v868
        %v939 = vpop.f32.mrb[0].mxu0
        %v940 = vadd.f32 0.0, %v939
        %v941 = vpop.f32.mrb[0].mxu0
        %942 = vdwg.mxu0
        %v944 = vsel %vm334, %v326, 0
        %v947 = vsel %vm334, %v294, 0
        %949 = vmatprep.subr.mxu0 0.0
        %950 = vmatpush1.xpose.msra.mxu0 %v947
        %951 = vmatprep.subr.mxu0 0.0
        %952 = vmatpush1.xpose.msra.mxu0 0.0
        %953 = vmatprep.subr.mxu0 0.0
        %954 = vmatpush1.xpose.msra.mxu0 0.0
        %955 = vmatprep.subr.mxu0 0.0
        %956 = vmatpush1.xpose.msra.mxu0 0.0
        %957 = vmatprep.subr.mxu0 0.0
        %958 = vmatpush1.xpose.msra.mxu0 0.0
        %959 = vmatprep.subr.mxu0 0.0
        %960 = vmatpush1.xpose.msra.mxu0 0.0
        %961 = vmatprep.subr.mxu0 0.0
        %962 = vmatpush1.xpose.msra.mxu0 0.0
        %963 = vmatprep.subr.mxu0 0.0
        %964 = vmatpush1.xpose.msra.mxu0 0.0
        %965 = vmatprep.subr.mxu0 0.0
        %966 = vmatpush1.xpose.msra.mxu0 0.0
        %967 = vmatprep.subr.mxu0 0.0
        %968 = vmatpush1.xpose.msra.mxu0 0.0
        %969 = vmatprep.subr.mxu0 0.0
        %970 = vmatpush1.xpose.msra.mxu0 0.0
        %971 = vmatprep.subr.mxu0 0.0
        %972 = vmatpush1.xpose.msra.mxu0 0.0
        %973 = vmatprep.subr.mxu0 0.0
        %974 = vmatpush1.xpose.msra.mxu0 0.0
        %975 = vmatprep.subr.mxu0 0.0
        %976 = vmatpush1.xpose.msra.mxu0 0.0
        %977 = vmatprep.subr.mxu0 0.0
        %978 = vmatpush1.xpose.msra.mxu0 0.0
        %979 = vmatprep.subr.mxu0 0.0
        %980 = vmatpush1.xpose.msra.mxu0 0.0
        %981 = vmatprep.subr.mxu0 0.0
        %982 = vmatpush1.xpose.msra.mxu0 0.0
        %983 = vmatprep.subr.mxu0 0.0
        %984 = vmatpush1.xpose.msra.mxu0 0.0
        %985 = vmatprep.subr.mxu0 0.0
        %986 = vmatpush1.xpose.msra.mxu0 0.0
        %987 = vmatprep.subr.mxu0 0.0
        %988 = vmatpush1.xpose.msra.mxu0 0.0
        %989 = vmatprep.subr.mxu0 0.0
        %990 = vmatpush1.xpose.msra.mxu0 0.0
        %991 = vmatprep.subr.mxu0 0.0
        %992 = vmatpush1.xpose.msra.mxu0 0.0
        %993 = vmatprep.subr.mxu0 0.0
        %994 = vmatpush1.xpose.msra.mxu0 0.0
        %995 = vmatprep.subr.mxu0 0.0
        %996 = vmatpush1.xpose.msra.mxu0 0.0
        %997 = vmatprep.subr.mxu0 0.0
        %998 = vmatpush1.xpose.msra.mxu0 0.0
        %999 = vmatprep.subr.mxu0 0.0
        %1000 = vmatpush1.xpose.msra.mxu0 0.0
        %1001 = vmatprep.subr.mxu0 0.0
        %1002 = vmatpush1.xpose.msra.mxu0 0.0
        %1003 = vmatprep.subr.mxu0 0.0
        %1004 = vmatpush1.xpose.msra.mxu0 0.0
        %1005 = vmatprep.subr.mxu0 0.0
        %1006 = vmatpush1.xpose.msra.mxu0 0.0
        %1007 = vmatprep.subr.mxu0 0.0
        %1008 = vmatpush1.xpose.msra.mxu0 0.0
        %1009 = vmatprep.subr.mxu0 0.0
        %1010 = vmatpush1.xpose.msra.mxu0 0.0
        %1011 = vmatprep.subr.mxu0 0.0
        %1012 = vmatpush1.xpose.msra.mxu0 0.0
        %1013 = vmatprep.mubr.f32.mxu0 0.0
        %1014 = vmatmul.mubr.f32.gmra.mrb[0].mxu0 %v944
        %v1015 = vpop.f32.mrb[0].mxu0
        %v1016 = vadd.f32 0.0, %v1015
        %v1017 = vpop.f32.mrb[0].mxu0
        %1018 = vdwg.mxu0
        %v1020 = vsel %vm334, %v327, 0
        %v1023 = vsel %vm334, %v295, 0
        %1025 = vmatprep.subr.mxu0 0.0
        %1026 = vmatpush1.xpose.msra.mxu0 %v1023
        %1027 = vmatprep.subr.mxu0 0.0
        %1028 = vmatpush1.xpose.msra.mxu0 0.0
        %1029 = vmatprep.subr.mxu0 0.0
        %1030 = vmatpush1.xpose.msra.mxu0 0.0
        %1031 = vmatprep.subr.mxu0 0.0
        %1032 = vmatpush1.xpose.msra.mxu0 0.0
        %1033 = vmatprep.subr.mxu0 0.0
        %1034 = vmatpush1.xpose.msra.mxu0 0.0
        %1035 = vmatprep.subr.mxu0 0.0
        %1036 = vmatpush1.xpose.msra.mxu0 0.0
        %1037 = vmatprep.subr.mxu0 0.0
        %1038 = vmatpush1.xpose.msra.mxu0 0.0
        %1039 = vmatprep.subr.mxu0 0.0
        %1040 = vmatpush1.xpose.msra.mxu0 0.0
        %1041 = vmatprep.subr.mxu0 0.0
        %1042 = vmatpush1.xpose.msra.mxu0 0.0
        %1043 = vmatprep.subr.mxu0 0.0
        %1044 = vmatpush1.xpose.msra.mxu0 0.0
        %1045 = vmatprep.subr.mxu0 0.0
        %1046 = vmatpush1.xpose.msra.mxu0 0.0
        %1047 = vmatprep.subr.mxu0 0.0
        %1048 = vmatpush1.xpose.msra.mxu0 0.0
        %1049 = vmatprep.subr.mxu0 0.0
        %1050 = vmatpush1.xpose.msra.mxu0 0.0
        %1051 = vmatprep.subr.mxu0 0.0
        %1052 = vmatpush1.xpose.msra.mxu0 0.0
        %1053 = vmatprep.subr.mxu0 0.0
        %1054 = vmatpush1.xpose.msra.mxu0 0.0
        %1055 = vmatprep.subr.mxu0 0.0
        %1056 = vmatpush1.xpose.msra.mxu0 0.0
        %1057 = vmatprep.subr.mxu0 0.0
        %1058 = vmatpush1.xpose.msra.mxu0 0.0
        %1059 = vmatprep.subr.mxu0 0.0
        %1060 = vmatpush1.xpose.msra.mxu0 0.0
        %1061 = vmatprep.subr.mxu0 0.0
        %1062 = vmatpush1.xpose.msra.mxu0 0.0
        %1063 = vmatprep.subr.mxu0 0.0
        %1064 = vmatpush1.xpose.msra.mxu0 0.0
        %1065 = vmatprep.subr.mxu0 0.0
        %1066 = vmatpush1.xpose.msra.mxu0 0.0
        %1067 = vmatprep.subr.mxu0 0.0
        %1068 = vmatpush1.xpose.msra.mxu0 0.0
        %1069 = vmatprep.subr.mxu0 0.0
        %1070 = vmatpush1.xpose.msra.mxu0 0.0
        %1071 = vmatprep.subr.mxu0 0.0
        %1072 = vmatpush1.xpose.msra.mxu0 0.0
        %1073 = vmatprep.subr.mxu0 0.0
        %1074 = vmatpush1.xpose.msra.mxu0 0.0
        %1075 = vmatprep.subr.mxu0 0.0
        %1076 = vmatpush1.xpose.msra.mxu0 0.0
        %1077 = vmatprep.subr.mxu0 0.0
        %1078 = vmatpush1.xpose.msra.mxu0 0.0
        %1079 = vmatprep.subr.mxu0 0.0
        %1080 = vmatpush1.xpose.msra.mxu0 0.0
        %1081 = vmatprep.subr.mxu0 0.0
        %1082 = vmatpush1.xpose.msra.mxu0 0.0
        %1083 = vmatprep.subr.mxu0 0.0
        %1084 = vmatpush1.xpose.msra.mxu0 0.0
        %1085 = vmatprep.subr.mxu0 0.0
        %1086 = vmatpush1.xpose.msra.mxu0 0.0
        %1087 = vmatprep.subr.mxu0 0.0
        %1088 = vmatpush1.xpose.msra.mxu0 0.0
        %1089 = vmatprep.mubr.f32.mxu0 0.0
        %1090 = vmatmul.mubr.f32.gmra.mrb[0].mxu0 %v1020
        %v1091 = vpop.f32.mrb[0].mxu0
        %v1092 = vadd.f32 0.0, %v1091
        %v1093 = vpop.f32.mrb[0].mxu0
        %1094 = vdwg.mxu0
        %v1096 = vsel %vm334, %v328, 0
        %v1099 = vsel %vm334, %v296, 0
        %1101 = vmatprep.subr.mxu0 0.0
        %1102 = vmatpush1.xpose.msra.mxu0 %v1099
        %1103 = vmatprep.subr.mxu0 0.0
        %1104 = vmatpush1.xpose.msra.mxu0 0.0
        %1105 = vmatprep.subr.mxu0 0.0
        %1106 = vmatpush1.xpose.msra.mxu0 0.0
        %1107 = vmatprep.subr.mxu0 0.0
        %1108 = vmatpush1.xpose.msra.mxu0 0.0
        %1109 = vmatprep.subr.mxu0 0.0
        %1110 = vmatpush1.xpose.msra.mxu0 0.0
        %1111 = vmatprep.subr.mxu0 0.0
        %1112 = vmatpush1.xpose.msra.mxu0 0.0
        %1113 = vmatprep.subr.mxu0 0.0
        %1114 = vmatpush1.xpose.msra.mxu0 0.0
        %1115 = vmatprep.subr.mxu0 0.0
        %1116 = vmatpush1.xpose.msra.mxu0 0.0
        %1117 = vmatprep.subr.mxu0 0.0
        %1118 = vmatpush1.xpose.msra.mxu0 0.0
        %1119 = vmatprep.subr.mxu0 0.0
        %1120 = vmatpush1.xpose.msra.mxu0 0.0
        %1121 = vmatprep.subr.mxu0 0.0
        %1122 = vmatpush1.xpose.msra.mxu0 0.0
        %1123 = vmatprep.subr.mxu0 0.0
        %1124 = vmatpush1.xpose.msra.mxu0 0.0
        %1125 = vmatprep.subr.mxu0 0.0
        %1126 = vmatpush1.xpose.msra.mxu0 0.0
        %1127 = vmatprep.subr.mxu0 0.0
        %1128 = vmatpush1.xpose.msra.mxu0 0.0
        %1129 = vmatprep.subr.mxu0 0.0
        %1130 = vmatpush1.xpose.msra.mxu0 0.0
        %1131 = vmatprep.subr.mxu0 0.0
        %1132 = vmatpush1.xpose.msra.mxu0 0.0
        %1133 = vmatprep.subr.mxu0 0.0
        %1134 = vmatpush1.xpose.msra.mxu0 0.0
        %1135 = vmatprep.subr.mxu0 0.0
        %1136 = vmatpush1.xpose.msra.mxu0 0.0
        %1137 = vmatprep.subr.mxu0 0.0
        %1138 = vmatpush1.xpose.msra.mxu0 0.0
        %1139 = vmatprep.subr.mxu0 0.0
        %1140 = vmatpush1.xpose.msra.mxu0 0.0
        %1141 = vmatprep.subr.mxu0 0.0
        %1142 = vmatpush1.xpose.msra.mxu0 0.0
        %1143 = vmatprep.subr.mxu0 0.0
        %1144 = vmatpush1.xpose.msra.mxu0 0.0
        %1145 = vmatprep.subr.mxu0 0.0
        %1146 = vmatpush1.xpose.msra.mxu0 0.0
        %1147 = vmatprep.subr.mxu0 0.0
        %1148 = vmatpush1.xpose.msra.mxu0 0.0
        %1149 = vmatprep.subr.mxu0 0.0
        %1150 = vmatpush1.xpose.msra.mxu0 0.0
        %1151 = vmatprep.subr.mxu0 0.0
        %1152 = vmatpush1.xpose.msra.mxu0 0.0
        %1153 = vmatprep.subr.mxu0 0.0
        %1154 = vmatpush1.xpose.msra.mxu0 0.0
        %1155 = vmatprep.subr.mxu0 0.0
        %1156 = vmatpush1.xpose.msra.mxu0 0.0
        %1157 = vmatprep.subr.mxu0 0.0
        %1158 = vmatpush1.xpose.msra.mxu0 0.0
        %1159 = vmatprep.subr.mxu0 0.0
        %1160 = vmatpush1.xpose.msra.mxu0 0.0
        %1161 = vmatprep.subr.mxu0 0.0
        %1162 = vmatpush1.xpose.msra.mxu0 0.0
        %1163 = vmatprep.subr.mxu0 0.0
        %1164 = vmatpush1.xpose.msra.mxu0 0.0
        %1165 = vmatprep.mubr.f32.mxu0 0.0
        %1166 = vmatmul.mubr.f32.gmra.mrb[0].mxu0 %v1096
        %v1167 = vpop.f32.mrb[0].mxu0
        %v1168 = vadd.f32 0.0, %v1167
        %v1169 = vpop.f32.mrb[0].mxu0
        %1170 = vdwg.mxu0
        %v1172 = vsel %vm334, %v329, 0
        %v1175 = vsel %vm334, %v297, 0
        %1177 = vmatprep.subr.mxu0 0.0
        %1178 = vmatpush1.xpose.msra.mxu0 %v1175
        %1179 = vmatprep.subr.mxu0 0.0
        %1180 = vmatpush1.xpose.msra.mxu0 0.0
        %1181 = vmatprep.subr.mxu0 0.0
        %1182 = vmatpush1.xpose.msra.mxu0 0.0
        %1183 = vmatprep.subr.mxu0 0.0
        %1184 = vmatpush1.xpose.msra.mxu0 0.0
        %1185 = vmatprep.subr.mxu0 0.0
        %1186 = vmatpush1.xpose.msra.mxu0 0.0
        %1187 = vmatprep.subr.mxu0 0.0
        %1188 = vmatpush1.xpose.msra.mxu0 0.0
        %1189 = vmatprep.subr.mxu0 0.0
        %1190 = vmatpush1.xpose.msra.mxu0 0.0
        %1191 = vmatprep.subr.mxu0 0.0
        %1192 = vmatpush1.xpose.msra.mxu0 0.0
        %1193 = vmatprep.subr.mxu0 0.0
        %1194 = vmatpush1.xpose.msra.mxu0 0.0
        %1195 = vmatprep.subr.mxu0 0.0
        %1196 = vmatpush1.xpose.msra.mxu0 0.0
        %1197 = vmatprep.subr.mxu0 0.0
        %1198 = vmatpush1.xpose.msra.mxu0 0.0
        %1199 = vmatprep.subr.mxu0 0.0
        %1200 = vmatpush1.xpose.msra.mxu0 0.0
        %1201 = vmatprep.subr.mxu0 0.0
        %1202 = vmatpush1.xpose.msra.mxu0 0.0
        %1203 = vmatprep.subr.mxu0 0.0
        %1204 = vmatpush1.xpose.msra.mxu0 0.0
        %1205 = vmatprep.subr.mxu0 0.0
        %1206 = vmatpush1.xpose.msra.mxu0 0.0
        %1207 = vmatprep.subr.mxu0 0.0
        %1208 = vmatpush1.xpose.msra.mxu0 0.0
        %1209 = vmatprep.subr.mxu0 0.0
        %1210 = vmatpush1.xpose.msra.mxu0 0.0
        %1211 = vmatprep.subr.mxu0 0.0
        %1212 = vmatpush1.xpose.msra.mxu0 0.0
        %1213 = vmatprep.subr.mxu0 0.0
        %1214 = vmatpush1.xpose.msra.mxu0 0.0
        %1215 = vmatprep.subr.mxu0 0.0
        %1216 = vmatpush1.xpose.msra.mxu0 0.0
        %1217 = vmatprep.subr.mxu0 0.0
        %1218 = vmatpush1.xpose.msra.mxu0 0.0
        %1219 = vmatprep.subr.mxu0 0.0
        %1220 = vmatpush1.xpose.msra.mxu0 0.0
        %1221 = vmatprep.subr.mxu0 0.0
        %1222 = vmatpush1.xpose.msra.mxu0 0.0
        %1223 = vmatprep.subr.mxu0 0.0
        %1224 = vmatpush1.xpose.msra.mxu0 0.0
        %1225 = vmatprep.subr.mxu0 0.0
        %1226 = vmatpush1.xpose.msra.mxu0 0.0
        %1227 = vmatprep.subr.mxu0 0.0
        %1228 = vmatpush1.xpose.msra.mxu0 0.0
        %1229 = vmatprep.subr.mxu0 0.0
        %1230 = vmatpush1.xpose.msra.mxu0 0.0
        %1231 = vmatprep.subr.mxu0 0.0
        %1232 = vmatpush1.xpose.msra.mxu0 0.0
        %1233 = vmatprep.subr.mxu0 0.0
        %1234 = vmatpush1.xpose.msra.mxu0 0.0
        %1235 = vmatprep.subr.mxu0 0.0
        %1236 = vmatpush1.xpose.msra.mxu0 0.0
        %1237 = vmatprep.subr.mxu0 0.0
        %1238 = vmatpush1.xpose.msra.mxu0 0.0
        %1239 = vmatprep.subr.mxu0 0.0
        %1240 = vmatpush1.xpose.msra.mxu0 0.0
        %1241 = vmatprep.mubr.f32.mxu0 0.0
        %1242 = vmatmul.mubr.f32.gmra.mrb[0].mxu0 %v1172
        %v1243 = vpop.f32.mrb[0].mxu0
        %v1244 = vadd.f32 0.0, %v1243
        %v1245 = vpop.f32.mrb[0].mxu0
        %1246 = vdwg.mxu0
        %v1248 = vsel %vm334, %v330, 0
        %v1251 = vsel %vm334, %v298, 0
        %1253 = vmatprep.subr.mxu0 0.0
        %1254 = vmatpush1.xpose.msra.mxu0 %v1251
        %1255 = vmatprep.subr.mxu0 0.0
        %1256 = vmatpush1.xpose.msra.mxu0 0.0
        %1257 = vmatprep.subr.mxu0 0.0
        %1258 = vmatpush1.xpose.msra.mxu0 0.0
        %1259 = vmatprep.subr.mxu0 0.0
        %1260 = vmatpush1.xpose.msra.mxu0 0.0
        %1261 = vmatprep.subr.mxu0 0.0
        %1262 = vmatpush1.xpose.msra.mxu0 0.0
        %1263 = vmatprep.subr.mxu0 0.0
        %1264 = vmatpush1.xpose.msra.mxu0 0.0
        %1265 = vmatprep.subr.mxu0 0.0
        %1266 = vmatpush1.xpose.msra.mxu0 0.0
        %1267 = vmatprep.subr.mxu0 0.0
        %1268 = vmatpush1.xpose.msra.mxu0 0.0
        %1269 = vmatprep.subr.mxu0 0.0
        %1270 = vmatpush1.xpose.msra.mxu0 0.0
        %1271 = vmatprep.subr.mxu0 0.0
        %1272 = vmatpush1.xpose.msra.mxu0 0.0
        %1273 = vmatprep.subr.mxu0 0.0
        %1274 = vmatpush1.xpose.msra.mxu0 0.0
        %1275 = vmatprep.subr.mxu0 0.0
        %1276 = vmatpush1.xpose.msra.mxu0 0.0
        %1277 = vmatprep.subr.mxu0 0.0
        %1278 = vmatpush1.xpose.msra.mxu0 0.0
        %1279 = vmatprep.subr.mxu0 0.0
        %1280 = vmatpush1.xpose.msra.mxu0 0.0
        %1281 = vmatprep.subr.mxu0 0.0
        %1282 = vmatpush1.xpose.msra.mxu0 0.0
        %1283 = vmatprep.subr.mxu0 0.0
        %1284 = vmatpush1.xpose.msra.mxu0 0.0
        %1285 = vmatprep.subr.mxu0 0.0
        %1286 = vmatpush1.xpose.msra.mxu0 0.0
        %1287 = vmatprep.subr.mxu0 0.0
        %1288 = vmatpush1.xpose.msra.mxu0 0.0
        %1289 = vmatprep.subr.mxu0 0.0
        %1290 = vmatpush1.xpose.msra.mxu0 0.0
        %1291 = vmatprep.subr.mxu0 0.0
        %1292 = vmatpush1.xpose.msra.mxu0 0.0
        %1293 = vmatprep.subr.mxu0 0.0
        %1294 = vmatpush1.xpose.msra.mxu0 0.0
        %1295 = vmatprep.subr.mxu0 0.0
        %1296 = vmatpush1.xpose.msra.mxu0 0.0
        %1297 = vmatprep.subr.mxu0 0.0
        %1298 = vmatpush1.xpose.msra.mxu0 0.0
        %1299 = vmatprep.subr.mxu0 0.0
        %1300 = vmatpush1.xpose.msra.mxu0 0.0
        %1301 = vmatprep.subr.mxu0 0.0
        %1302 = vmatpush1.xpose.msra.mxu0 0.0
        %1303 = vmatprep.subr.mxu0 0.0
        %1304 = vmatpush1.xpose.msra.mxu0 0.0
        %1305 = vmatprep.subr.mxu0 0.0
        %1306 = vmatpush1.xpose.msra.mxu0 0.0
        %1307 = vmatprep.subr.mxu0 0.0
        %1308 = vmatpush1.xpose.msra.mxu0 0.0
        %1309 = vmatprep.subr.mxu0 0.0
        %1310 = vmatpush1.xpose.msra.mxu0 0.0
        %1311 = vmatprep.subr.mxu0 0.0
        %1312 = vmatpush1.xpose.msra.mxu0 0.0
        %1313 = vmatprep.subr.mxu0 0.0
        %1314 = vmatpush1.xpose.msra.mxu0 0.0
        %1315 = vmatprep.subr.mxu0 0.0
        %1316 = vmatpush1.xpose.msra.mxu0 0.0
        %1317 = vmatprep.mubr.f32.mxu0 0.0
        %1318 = vmatmul.mubr.f32.gmra.mrb[0].mxu0 %v1248
        %v1319 = vpop.f32.mrb[0].mxu0
        %v1320 = vadd.f32 0.0, %v1319
        %v1321 = vpop.f32.mrb[0].mxu0
        %1322 = vdwg.mxu0
        %v1324 = vsel %vm334, %v331, 0
        %v1327 = vsel %vm334, %v299, 0
        %1329 = vmatprep.subr.mxu0 0.0
        %1330 = vmatpush1.xpose.msra.mxu0 %v1327
        %1331 = vmatprep.subr.mxu0 0.0
        %1332 = vmatpush1.xpose.msra.mxu0 0.0
        %1333 = vmatprep.subr.mxu0 0.0
        %1334 = vmatpush1.xpose.msra.mxu0 0.0
        %1335 = vmatprep.subr.mxu0 0.0
        %1336 = vmatpush1.xpose.msra.mxu0 0.0
        %1337 = vmatprep.subr.mxu0 0.0
        %1338 = vmatpush1.xpose.msra.mxu0 0.0
        %1339 = vmatprep.subr.mxu0 0.0
        %1340 = vmatpush1.xpose.msra.mxu0 0.0
        %1341 = vmatprep.subr.mxu0 0.0
        %1342 = vmatpush1.xpose.msra.mxu0 0.0
        %1343 = vmatprep.subr.mxu0 0.0
        %1344 = vmatpush1.xpose.msra.mxu0 0.0
        %1345 = vmatprep.subr.mxu0 0.0
        %1346 = vmatpush1.xpose.msra.mxu0 0.0
        %1347 = vmatprep.subr.mxu0 0.0
        %1348 = vmatpush1.xpose.msra.mxu0 0.0
        %1349 = vmatprep.subr.mxu0 0.0
        %1350 = vmatpush1.xpose.msra.mxu0 0.0
        %1351 = vmatprep.subr.mxu0 0.0
        %1352 = vmatpush1.xpose.msra.mxu0 0.0
        %1353 = vmatprep.subr.mxu0 0.0
        %1354 = vmatpush1.xpose.msra.mxu0 0.0
        %1355 = vmatprep.subr.mxu0 0.0
        %1356 = vmatpush1.xpose.msra.mxu0 0.0
        %1357 = vmatprep.subr.mxu0 0.0
        %1358 = vmatpush1.xpose.msra.mxu0 0.0
        %1359 = vmatprep.subr.mxu0 0.0
        %1360 = vmatpush1.xpose.msra.mxu0 0.0
        %1361 = vmatprep.subr.mxu0 0.0
        %1362 = vmatpush1.xpose.msra.mxu0 0.0
        %1363 = vmatprep.subr.mxu0 0.0
        %1364 = vmatpush1.xpose.msra.mxu0 0.0
        %1365 = vmatprep.subr.mxu0 0.0
        %1366 = vmatpush1.xpose.msra.mxu0 0.0
        %1367 = vmatprep.subr.mxu0 0.0
        %1368 = vmatpush1.xpose.msra.mxu0 0.0
        %1369 = vmatprep.subr.mxu0 0.0
        %1370 = vmatpush1.xpose.msra.mxu0 0.0
        %1371 = vmatprep.subr.mxu0 0.0
        %1372 = vmatpush1.xpose.msra.mxu0 0.0
        %1373 = vmatprep.subr.mxu0 0.0
        %1374 = vmatpush1.xpose.msra.mxu0 0.0
        %1375 = vmatprep.subr.mxu0 0.0
        %1376 = vmatpush1.xpose.msra.mxu0 0.0
        %1377 = vmatprep.subr.mxu0 0.0
        %1378 = vmatpush1.xpose.msra.mxu0 0.0
        %1379 = vmatprep.subr.mxu0 0.0
        %1380 = vmatpush1.xpose.msra.mxu0 0.0
        %1381 = vmatprep.subr.mxu0 0.0
        %1382 = vmatpush1.xpose.msra.mxu0 0.0
        %1383 = vmatprep.subr.mxu0 0.0
        %1384 = vmatpush1.xpose.msra.mxu0 0.0
        %1385 = vmatprep.subr.mxu0 0.0
        %1386 = vmatpush1.xpose.msra.mxu0 0.0
        %1387 = vmatprep.subr.mxu0 0.0
        %1388 = vmatpush1.xpose.msra.mxu0 0.0
        %1389 = vmatprep.subr.mxu0 0.0
        %1390 = vmatpush1.xpose.msra.mxu0 0.0
        %1391 = vmatprep.subr.mxu0 0.0
        %1392 = vmatpush1.xpose.msra.mxu0 0.0
        %1393 = vmatprep.mubr.f32.mxu0 0.0
        %1394 = vmatmul.mubr.f32.gmra.mrb[0].mxu0 %v1324
        %v1395 = vpop.f32.mrb[0].mxu0
        %v1396 = vadd.f32 0.0, %v1395
        %v1397 = vpop.f32.mrb[0].mxu0
        %1398 = vdwg.mxu0
        %v1400 = vsel %vm334, %v332, 0
        %v1403 = vsel %vm334, %v300, 0
        %1405 = vmatprep.subr.mxu0 0.0
        %1406 = vmatpush1.xpose.msra.mxu0 %v1403
        %1407 = vmatprep.subr.mxu0 0.0
        %1408 = vmatpush1.xpose.msra.mxu0 0.0
        %1409 = vmatprep.subr.mxu0 0.0
        %1410 = vmatpush1.xpose.msra.mxu0 0.0
        %1411 = vmatprep.subr.mxu0 0.0
        %1412 = vmatpush1.xpose.msra.mxu0 0.0
        %1413 = vmatprep.subr.mxu0 0.0
        %1414 = vmatpush1.xpose.msra.mxu0 0.0
        %1415 = vmatprep.subr.mxu0 0.0
        %1416 = vmatpush1.xpose.msra.mxu0 0.0
        %1417 = vmatprep.subr.mxu0 0.0
        %1418 = vmatpush1.xpose.msra.mxu0 0.0
        %1419 = vmatprep.subr.mxu0 0.0
        %1420 = vmatpush1.xpose.msra.mxu0 0.0
        %1421 = vmatprep.subr.mxu0 0.0
        %1422 = vmatpush1.xpose.msra.mxu0 0.0
        %1423 = vmatprep.subr.mxu0 0.0
        %1424 = vmatpush1.xpose.msra.mxu0 0.0
        %1425 = vmatprep.subr.mxu0 0.0
        %1426 = vmatpush1.xpose.msra.mxu0 0.0
        %1427 = vmatprep.subr.mxu0 0.0
        %1428 = vmatpush1.xpose.msra.mxu0 0.0
        %1429 = vmatprep.subr.mxu0 0.0
        %1430 = vmatpush1.xpose.msra.mxu0 0.0
        %1431 = vmatprep.subr.mxu0 0.0
        %1432 = vmatpush1.xpose.msra.mxu0 0.0
        %1433 = vmatprep.subr.mxu0 0.0
        %1434 = vmatpush1.xpose.msra.mxu0 0.0
        %1435 = vmatprep.subr.mxu0 0.0
        %1436 = vmatpush1.xpose.msra.mxu0 0.0
        %1437 = vmatprep.subr.mxu0 0.0
        %1438 = vmatpush1.xpose.msra.mxu0 0.0
        %1439 = vmatprep.subr.mxu0 0.0
        %1440 = vmatpush1.xpose.msra.mxu0 0.0
        %1441 = vmatprep.subr.mxu0 0.0
        %1442 = vmatpush1.xpose.msra.mxu0 0.0
        %1443 = vmatprep.subr.mxu0 0.0
        %1444 = vmatpush1.xpose.msra.mxu0 0.0
        %1445 = vmatprep.subr.mxu0 0.0
        %1446 = vmatpush1.xpose.msra.mxu0 0.0
        %1447 = vmatprep.subr.mxu0 0.0
        %1448 = vmatpush1.xpose.msra.mxu0 0.0
        %1449 = vmatprep.subr.mxu0 0.0
        %1450 = vmatpush1.xpose.msra.mxu0 0.0
        %1451 = vmatprep.subr.mxu0 0.0
        %1452 = vmatpush1.xpose.msra.mxu0 0.0
        %1453 = vmatprep.subr.mxu0 0.0
        %1454 = vmatpush1.xpose.msra.mxu0 0.0
        %1455 = vmatprep.subr.mxu0 0.0
        %1456 = vmatpush1.xpose.msra.mxu0 0.0
        %1457 = vmatprep.subr.mxu0 0.0
        %1458 = vmatpush1.xpose.msra.mxu0 0.0
        %1459 = vmatprep.subr.mxu0 0.0
        %1460 = vmatpush1.xpose.msra.mxu0 0.0
        %1461 = vmatprep.subr.mxu0 0.0
        %1462 = vmatpush1.xpose.msra.mxu0 0.0
        %1463 = vmatprep.subr.mxu0 0.0
        %1464 = vmatpush1.xpose.msra.mxu0 0.0
        %1465 = vmatprep.subr.mxu0 0.0
        %1466 = vmatpush1.xpose.msra.mxu0 0.0
        %1467 = vmatprep.subr.mxu0 0.0
        %1468 = vmatpush1.xpose.msra.mxu0 0.0
        %1469 = vmatprep.mubr.f32.mxu0 0.0
        %1470 = vmatmul.mubr.f32.gmra.mrb[0].mxu0 %v1400
        %v1471 = vpop.f32.mrb[0].mxu0
        %v1472 = vadd.f32 0.0, %v1471
        %v1473 = vpop.f32.mrb[0].mxu0
        %1474 = vdwg.mxu0
        %v1476 = vsel %vm334, %v333, 0
        %v1479 = vsel %vm334, %v301, 0
        %1481 = vmatprep.subr.mxu0 0.0
        %1482 = vmatpush1.xpose.msra.mxu0 %v1479
        %1483 = vmatprep.subr.mxu0 0.0
        %1484 = vmatpush1.xpose.msra.mxu0 0.0
        %1485 = vmatprep.subr.mxu0 0.0
        %1486 = vmatpush1.xpose.msra.mxu0 0.0
        %1487 = vmatprep.subr.mxu0 0.0
        %1488 = vmatpush1.xpose.msra.mxu0 0.0
        %1489 = vmatprep.subr.mxu0 0.0
        %1490 = vmatpush1.xpose.msra.mxu0 0.0
        %1491 = vmatprep.subr.mxu0 0.0
        %1492 = vmatpush1.xpose.msra.mxu0 0.0
        %1493 = vmatprep.subr.mxu0 0.0
        %1494 = vmatpush1.xpose.msra.mxu0 0.0
        %1495 = vmatprep.subr.mxu0 0.0
        %1496 = vmatpush1.xpose.msra.mxu0 0.0
        %1497 = vmatprep.subr.mxu0 0.0
        %1498 = vmatpush1.xpose.msra.mxu0 0.0
        %1499 = vmatprep.subr.mxu0 0.0
        %1500 = vmatpush1.xpose.msra.mxu0 0.0
        %1501 = vmatprep.subr.mxu0 0.0
        %1502 = vmatpush1.xpose.msra.mxu0 0.0
        %1503 = vmatprep.subr.mxu0 0.0
        %1504 = vmatpush1.xpose.msra.mxu0 0.0
        %1505 = vmatprep.subr.mxu0 0.0
        %1506 = vmatpush1.xpose.msra.mxu0 0.0
        %1507 = vmatprep.subr.mxu0 0.0
        %1508 = vmatpush1.xpose.msra.mxu0 0.0
        %1509 = vmatprep.subr.mxu0 0.0
        %1510 = vmatpush1.xpose.msra.mxu0 0.0
        %1511 = vmatprep.subr.mxu0 0.0
        %1512 = vmatpush1.xpose.msra.mxu0 0.0
        %1513 = vmatprep.subr.mxu0 0.0
        %1514 = vmatpush1.xpose.msra.mxu0 0.0
        %1515 = vmatprep.subr.mxu0 0.0
        %1516 = vmatpush1.xpose.msra.mxu0 0.0
        %1517 = vmatprep.subr.mxu0 0.0
        %1518 = vmatpush1.xpose.msra.mxu0 0.0
        %1519 = vmatprep.subr.mxu0 0.0
        %1520 = vmatpush1.xpose.msra.mxu0 0.0
        %1521 = vmatprep.subr.mxu0 0.0
        %1522 = vmatpush1.xpose.msra.mxu0 0.0
        %1523 = vmatprep.subr.mxu0 0.0
        %1524 = vmatpush1.xpose.msra.mxu0 0.0
        %1525 = vmatprep.subr.mxu0 0.0
        %1526 = vmatpush1.xpose.msra.mxu0 0.0
        %1527 = vmatprep.subr.mxu0 0.0
        %1528 = vmatpush1.xpose.msra.mxu0 0.0
        %1529 = vmatprep.subr.mxu0 0.0
        %1530 = vmatpush1.xpose.msra.mxu0 0.0
        %1531 = vmatprep.subr.mxu0 0.0
        %1532 = vmatpush1.xpose.msra.mxu0 0.0
        %1533 = vmatprep.subr.mxu0 0.0
        %1534 = vmatpush1.xpose.msra.mxu0 0.0
        %1535 = vmatprep.subr.mxu0 0.0
        %1536 = vmatpush1.xpose.msra.mxu0 0.0
        %1537 = vmatprep.subr.mxu0 0.0
        %1538 = vmatpush1.xpose.msra.mxu0 0.0
        %1539 = vmatprep.subr.mxu0 0.0
        %1540 = vmatpush1.xpose.msra.mxu0 0.0
        %1541 = vmatprep.subr.mxu0 0.0
        %1542 = vmatpush1.xpose.msra.mxu0 0.0
        %1543 = vmatprep.subr.mxu0 0.0
        %1544 = vmatpush1.xpose.msra.mxu0 0.0
        %1545 = vmatprep.mubr.f32.mxu0 0.0
        %1546 = vmatmul.mubr.f32.gmra.mrb[0].mxu0 %v1476
        %v1547 = vpop.f32.mrb[0].mxu0
        %v1548 = vadd.f32 0.0, %v1547
        %v1549 = vpop.f32.mrb[0].mxu0
        %1550 = vdwg.mxu0
        %vm1551 = vcmask 27648
        %v1552 = vsel %vm1551, %v408, -inf
        %1553 = vmax.xlane.f32.xlu0 %v1552
        %v1554 = vpop.xlane.xlu0 %1553
        %v1555 = vsel %vm1551, %v484, -inf
        %1556 = vmax.xlane.f32.xlu0 %v1555
        %v1557 = vpop.xlane.xlu0 %1556
        %v1558 = vsel %vm1551, %v560, -inf
        %1559 = vmax.xlane.f32.xlu0 %v1558
        %v1560 = vpop.xlane.xlu0 %1559
        %v1561 = vsel %vm1551, %v636, -inf
        %1562 = vmax.xlane.f32.xlu0 %v1561
        %v1563 = vpop.xlane.xlu0 %1562
        %v1564 = vsel %vm1551, %v712, -inf
        %1565 = vmax.xlane.f32.xlu0 %v1564
        %v1566 = vpop.xlane.xlu0 %1565
        %v1567 = vsel %vm1551, %v788, -inf
        %1568 = vmax.xlane.f32.xlu0 %v1567
        %v1569 = vpop.xlane.xlu0 %1568
        %v1570 = vsel %vm1551, %v864, -inf
        %1571 = vmax.xlane.f32.xlu0 %v1570
        %v1572 = vpop.xlane.xlu0 %1571
        %v1573 = vsel %vm1551, %v940, -inf
        %1574 = vmax.xlane.f32.xlu0 %v1573
        %v1575 = vpop.xlane.xlu0 %1574
        %v1576 = vsel %vm1551, %v1016, -inf
        %1577 = vmax.xlane.f32.xlu0 %v1576
        %v1578 = vpop.xlane.xlu0 %1577
        %v1579 = vsel %vm1551, %v1092, -inf
        %1580 = vmax.xlane.f32.xlu0 %v1579
        %v1581 = vpop.xlane.xlu0 %1580
        %v1582 = vsel %vm1551, %v1168, -inf
        %1583 = vmax.xlane.f32.xlu0 %v1582
        %v1584 = vpop.xlane.xlu0 %1583
        %v1585 = vsel %vm1551, %v1244, -inf
        %1586 = vmax.xlane.f32.xlu0 %v1585
        %v1587 = vpop.xlane.xlu0 %1586
        %v1588 = vsel %vm1551, %v1320, -inf
        %1589 = vmax.xlane.f32.xlu0 %v1588
        %v1590 = vpop.xlane.xlu0 %1589
        %v1591 = vsel %vm1551, %v1396, -inf
        %1592 = vmax.xlane.f32.xlu0 %v1591
        %v1593 = vpop.xlane.xlu0 %1592
        %v1594 = vsel %vm1551, %v1472, -inf
        %1595 = vmax.xlane.f32.xlu0 %v1594
        %v1596 = vpop.xlane.xlu0 %1595
        %v1597 = vsel %vm1551, %v1548, -inf
        %1598 = vmax.xlane.f32.xlu0 %v1597
        %v1599 = vpop.xlane.xlu0 %1598
        %v1600 = vsub.f32 %v408, %v1554
        %v1601 = vsub.f32 %v484, %v1557
        %v1602 = vsub.f32 %v560, %v1560
        %v1603 = vsub.f32 %v636, %v1563
        %v1604 = vsub.f32 %v712, %v1566
        %v1605 = vsub.f32 %v788, %v1569
        %v1606 = vsub.f32 %v864, %v1572
        %v1607 = vsub.f32 %v940, %v1575
        %v1608 = vsub.f32 %v1016, %v1578
        %v1609 = vsub.f32 %v1092, %v1581
        %v1610 = vsub.f32 %v1168, %v1584
        %v1611 = vsub.f32 %v1244, %v1587
        %v1612 = vsub.f32 %v1320, %v1590
        %v1613 = vsub.f32 %v1396, %v1593
        %v1614 = vsub.f32 %v1472, %v1596
        %v1615 = vsub.f32 %v1548, %v1599
        %v1616 = vmul.f32 %v1600, 1.442695
        %v1617 = vpow.pop %v1616
        %v1618 = vmul.f32 %v1601, 1.442695
        %v1619 = vpow.pop %v1618
        %v1620 = vmul.f32 %v1602, 1.442695
        %v1621 = vpow.pop %v1620
        %v1622 = vmul.f32 %v1603, 1.442695
        %v1623 = vpow.pop %v1622
        %v1624 = vmul.f32 %v1604, 1.442695
        %v1625 = vpow.pop %v1624
        %v1626 = vmul.f32 %v1605, 1.442695
        %v1627 = vpow.pop %v1626
        %v1628 = vmul.f32 %v1606, 1.442695
        %v1629 = vpow.pop %v1628
        %v1630 = vmul.f32 %v1607, 1.442695
        %v1631 = vpow.pop %v1630
        %v1632 = vmul.f32 %v1608, 1.442695
        %v1633 = vpow.pop %v1632
        %v1634 = vmul.f32 %v1609, 1.442695
        %v1635 = vpow.pop %v1634
        %v1636 = vmul.f32 %v1610, 1.442695
        %v1637 = vpow.pop %v1636
        %v1638 = vmul.f32 %v1611, 1.442695
        %v1639 = vpow.pop %v1638
        %v1640 = vmul.f32 %v1612, 1.442695
        %v1641 = vpow.pop %v1640
        %v1642 = vmul.f32 %v1613, 1.442695
        %v1643 = vpow.pop %v1642
        %v1644 = vmul.f32 %v1614, 1.442695
        %v1645 = vpow.pop %v1644
        %v1646 = vmul.f32 %v1615, 1.442695
        %v1647 = vpow.pop %v1646
        %v1648 = vsel %vm1551, %v1617, 0.0
        %1649 = vadd.xlane.f32.xlu0 %v1648
        %v1650 = vpop.xlane.xlu0 %1649
        %v1651 = vsel %vm1551, %v1619, 0.0
        %1652 = vadd.xlane.f32.xlu0 %v1651
        %v1653 = vpop.xlane.xlu0 %1652
        %v1654 = vsel %vm1551, %v1621, 0.0
        %1655 = vadd.xlane.f32.xlu0 %v1654
        %v1656 = vpop.xlane.xlu0 %1655
        %v1657 = vsel %vm1551, %v1623, 0.0
        %1658 = vadd.xlane.f32.xlu0 %v1657
        %v1659 = vpop.xlane.xlu0 %1658
        %v1660 = vsel %vm1551, %v1625, 0.0
        %1661 = vadd.xlane.f32.xlu0 %v1660
        %v1662 = vpop.xlane.xlu0 %1661
        %v1663 = vsel %vm1551, %v1627, 0.0
        %1664 = vadd.xlane.f32.xlu0 %v1663
        %v1665 = vpop.xlane.xlu0 %1664
        %v1666 = vsel %vm1551, %v1629, 0.0
        %1667 = vadd.xlane.f32.xlu0 %v1666
        %v1668 = vpop.xlane.xlu0 %1667
        %v1669 = vsel %vm1551, %v1631, 0.0
        %1670 = vadd.xlane.f32.xlu0 %v1669
        %v1671 = vpop.xlane.xlu0 %1670
        %v1672 = vsel %vm1551, %v1633, 0.0
        %1673 = vadd.xlane.f32.xlu0 %v1672
        %v1674 = vpop.xlane.xlu0 %1673
        %v1675 = vsel %vm1551, %v1635, 0.0
        %1676 = vadd.xlane.f32.xlu0 %v1675
        %v1677 = vpop.xlane.xlu0 %1676
        %v1678 = vsel %vm1551, %v1637, 0.0
        %1679 = vadd.xlane.f32.xlu0 %v1678
        %v1680 = vpop.xlane.xlu0 %1679
        %v1681 = vsel %vm1551, %v1639, 0.0
        %1682 = vadd.xlane.f32.xlu0 %v1681
        %v1683 = vpop.xlane.xlu0 %1682
        %v1684 = vsel %vm1551, %v1641, 0.0
        %1685 = vadd.xlane.f32.xlu0 %v1684
        %v1686 = vpop.xlane.xlu0 %1685
        %v1687 = vsel %vm1551, %v1643, 0.0
        %1688 = vadd.xlane.f32.xlu0 %v1687
        %v1689 = vpop.xlane.xlu0 %1688
        %v1690 = vsel %vm1551, %v1645, 0.0
        %1691 = vadd.xlane.f32.xlu0 %v1690
        %v1692 = vpop.xlane.xlu0 %1691
        %v1693 = vsel %vm1551, %v1647, 0.0
        %1694 = vadd.xlane.f32.xlu0 %v1693
        %v1695 = vpop.xlane.xlu0 %1694
        %v1696 = vrcp.pop %v1650
        %v1697 = vrcp.pop %v1653
        %v1698 = vrcp.pop %v1656
        %v1699 = vrcp.pop %v1659
        %v1700 = vrcp.pop %v1662
        %v1701 = vrcp.pop %v1665
        %v1702 = vrcp.pop %v1668
        %v1703 = vrcp.pop %v1671
        %v1704 = vrcp.pop %v1674
        %v1705 = vrcp.pop %v1677
        %v1706 = vrcp.pop %v1680
        %v1707 = vrcp.pop %v1683
        %v1708 = vrcp.pop %v1686
        %v1709 = vrcp.pop %v1689
        %v1710 = vrcp.pop %v1692
        %v1711 = vrcp.pop %v1695
        %v1712 = vmul.f32 %v1617, %v1696
        %v1713 = vmul.f32 %v1619, %v1697
        %v1714 = vmul.f32 %v1621, %v1698
        %v1715 = vmul.f32 %v1623, %v1699
        %v1716 = vmul.f32 %v1625, %v1700
        %v1717 = vmul.f32 %v1627, %v1701
        %v1718 = vmul.f32 %v1629, %v1702
        %v1719 = vmul.f32 %v1631, %v1703
        %v1720 = vmul.f32 %v1633, %v1704
        %v1721 = vmul.f32 %v1635, %v1705
        %v1722 = vmul.f32 %v1637, %v1706
        %v1723 = vmul.f32 %v1639, %v1707
        %v1724 = vmul.f32 %v1641, %v1708
        %v1725 = vmul.f32 %v1643, %v1709
        %v1726 = vmul.f32 %v1645, %v1710
        %v1727 = vmul.f32 %v1647, %v1711
        %vm1728 = vcmask 31744
        %v1730 = vsel %vm1728, %v1712, 0
        %vm1732 = vcmask 1043456
        %v1734 = vsel %vm1732, %v302, 0
        %1736 = vmatprep.subr.mxu0 0.0
        %1737 = vmatpush1.msra.mxu0 %v1734
        %1738 = vmatprep.subr.mxu0 0.0
        %1739 = vmatpush1.msra.mxu0 0.0
        %1740 = vmatprep.subr.mxu0 0.0
        %1741 = vmatpush1.msra.mxu0 0.0
        %1742 = vmatprep.subr.mxu0 0.0
        %1743 = vmatpush1.msra.mxu0 0.0
        %1744 = vmatprep.subr.mxu0 0.0
        %1745 = vmatpush1.msra.mxu0 0.0
        %1746 = vmatprep.subr.mxu0 0.0
        %1747 = vmatpush1.msra.mxu0 0.0
        %1748 = vmatprep.subr.mxu0 0.0
        %1749 = vmatpush1.msra.mxu0 0.0
        %1750 = vmatprep.subr.mxu0 0.0
        %1751 = vmatpush1.msra.mxu0 0.0
        %1752 = vmatprep.subr.mxu0 0.0
        %1753 = vmatpush1.msra.mxu0 0.0
        %1754 = vmatprep.subr.mxu0 0.0
        %1755 = vmatpush1.msra.mxu0 0.0
        %1756 = vmatprep.subr.mxu0 0.0
        %1757 = vmatpush1.msra.mxu0 0.0
        %1758 = vmatprep.subr.mxu0 0.0
        %1759 = vmatpush1.msra.mxu0 0.0
        %1760 = vmatprep.subr.mxu0 0.0
        %1761 = vmatpush1.msra.mxu0 0.0
        %1762 = vmatprep.subr.mxu0 0.0
        %1763 = vmatpush1.msra.mxu0 0.0
        %1764 = vmatprep.subr.mxu0 0.0
        %1765 = vmatpush1.msra.mxu0 0.0
        %1766 = vmatprep.subr.mxu0 0.0
        %1767 = vmatpush1.msra.mxu0 0.0
        %1768 = vmatprep.subr.mxu0 0.0
        %1769 = vmatpush1.msra.mxu0 0.0
        %1770 = vmatprep.subr.mxu0 0.0
        %1771 = vmatpush1.msra.mxu0 0.0
        %1772 = vmatprep.subr.mxu0 0.0
        %1773 = vmatpush1.msra.mxu0 0.0
        %1774 = vmatprep.subr.mxu0 0.0
        %1775 = vmatpush1.msra.mxu0 0.0
        %1776 = vmatprep.subr.mxu0 0.0
        %1777 = vmatpush1.msra.mxu0 0.0
        %1778 = vmatprep.subr.mxu0 0.0
        %1779 = vmatpush1.msra.mxu0 0.0
        %1780 = vmatprep.subr.mxu0 0.0
        %1781 = vmatpush1.msra.mxu0 0.0
        %1782 = vmatprep.subr.mxu0 0.0
        %1783 = vmatpush1.msra.mxu0 0.0
        %1784 = vmatprep.subr.mxu0 0.0
        %1785 = vmatpush1.msra.mxu0 0.0
        %1786 = vmatprep.subr.mxu0 0.0
        %1787 = vmatpush1.msra.mxu0 0.0
        %1788 = vmatprep.subr.mxu0 0.0
        %1789 = vmatpush1.msra.mxu0 0.0
        %1790 = vmatprep.subr.mxu0 0.0
        %1791 = vmatpush1.msra.mxu0 0.0
        %1792 = vmatprep.subr.mxu0 0.0
        %1793 = vmatpush1.msra.mxu0 0.0
        %1794 = vmatprep.subr.mxu0 0.0
        %1795 = vmatpush1.msra.mxu0 0.0
        %1796 = vmatprep.subr.mxu0 0.0
        %1797 = vmatpush1.msra.mxu0 0.0
        %1798 = vmatprep.subr.mxu0 0.0
        %1799 = vmatpush1.msra.mxu0 0.0
        %1800 = vmatprep.mubr.f32.mxu0 0.0
        %1801 = vmatmul.mubr.f32.gmra.mrb[0].mxu0 %v1730
        %v1802 = vpop.f32.mrb[0].mxu0
        %v1803 = vadd.f32 0.0, %v1802
        %v1804 = vpop.f32.mrb[0].mxu0
        %1805 = vdwg.mxu0
        %v1807 = vsel %vm1728, %v1713, 0
        %v1810 = vsel %vm1732, %v303, 0
        %1812 = vmatprep.subr.mxu0 0.0
        %1813 = vmatpush1.msra.mxu0 %v1810
        %1814 = vmatprep.subr.mxu0 0.0
        %1815 = vmatpush1.msra.mxu0 0.0
        %1816 = vmatprep.subr.mxu0 0.0
        %1817 = vmatpush1.msra.mxu0 0.0
        %1818 = vmatprep.subr.mxu0 0.0
        %1819 = vmatpush1.msra.mxu0 0.0
        %1820 = vmatprep.subr.mxu0 0.0
        %1821 = vmatpush1.msra.mxu0 0.0
        %1822 = vmatprep.subr.mxu0 0.0
        %1823 = vmatpush1.msra.mxu0 0.0
        %1824 = vmatprep.subr.mxu0 0.0
        %1825 = vmatpush1.msra.mxu0 0.0
        %1826 = vmatprep.subr.mxu0 0.0
        %1827 = vmatpush1.msra.mxu0 0.0
        %1828 = vmatprep.subr.mxu0 0.0
        %1829 = vmatpush1.msra.mxu0 0.0
        %1830 = vmatprep.subr.mxu0 0.0
        %1831 = vmatpush1.msra.mxu0 0.0
        %1832 = vmatprep.subr.mxu0 0.0
        %1833 = vmatpush1.msra.mxu0 0.0
        %1834 = vmatprep.subr.mxu0 0.0
        %1835 = vmatpush1.msra.mxu0 0.0
        %1836 = vmatprep.subr.mxu0 0.0
        %1837 = vmatpush1.msra.mxu0 0.0
        %1838 = vmatprep.subr.mxu0 0.0
        %1839 = vmatpush1.msra.mxu0 0.0
        %1840 = vmatprep.subr.mxu0 0.0
        %1841 = vmatpush1.msra.mxu0 0.0
        %1842 = vmatprep.subr.mxu0 0.0
        %1843 = vmatpush1.msra.mxu0 0.0
        %1844 = vmatprep.subr.mxu0 0.0
        %1845 = vmatpush1.msra.mxu0 0.0
        %1846 = vmatprep.subr.mxu0 0.0
        %1847 = vmatpush1.msra.mxu0 0.0
        %1848 = vmatprep.subr.mxu0 0.0
        %1849 = vmatpush1.msra.mxu0 0.0
        %1850 = vmatprep.subr.mxu0 0.0
        %1851 = vmatpush1.msra.mxu0 0.0
        %1852 = vmatprep.subr.mxu0 0.0
        %1853 = vmatpush1.msra.mxu0 0.0
        %1854 = vmatprep.subr.mxu0 0.0
        %1855 = vmatpush1.msra.mxu0 0.0
        %1856 = vmatprep.subr.mxu0 0.0
        %1857 = vmatpush1.msra.mxu0 0.0
        %1858 = vmatprep.subr.mxu0 0.0
        %1859 = vmatpush1.msra.mxu0 0.0
        %1860 = vmatprep.subr.mxu0 0.0
        %1861 = vmatpush1.msra.mxu0 0.0
        %1862 = vmatprep.subr.mxu0 0.0
        %1863 = vmatpush1.msra.mxu0 0.0
        %1864 = vmatprep.subr.mxu0 0.0
        %1865 = vmatpush1.msra.mxu0 0.0
        %1866 = vmatprep.subr.mxu0 0.0
        %1867 = vmatpush1.msra.mxu0 0.0
        %1868 = vmatprep.subr.mxu0 0.0
        %1869 = vmatpush1.msra.mxu0 0.0
        %1870 = vmatprep.subr.mxu0 0.0
        %1871 = vmatpush1.msra.mxu0 0.0
        %1872 = vmatprep.subr.mxu0 0.0
        %1873 = vmatpush1.msra.mxu0 0.0
        %1874 = vmatprep.subr.mxu0 0.0
        %1875 = vmatpush1.msra.mxu0 0.0
        %1876 = vmatprep.mubr.f32.mxu0 0.0
        %1877 = vmatmul.mubr.f32.gmra.mrb[0].mxu0 %v1807
        %v1878 = vpop.f32.mrb[0].mxu0
        %v1879 = vadd.f32 0.0, %v1878
        %v1880 = vpop.f32.mrb[0].mxu0
        %1881 = vdwg.mxu0
        %v1883 = vsel %vm1728, %v1714, 0
        %v1886 = vsel %vm1732, %v304, 0
        %1888 = vmatprep.subr.mxu0 0.0
        %1889 = vmatpush1.msra.mxu0 %v1886
        %1890 = vmatprep.subr.mxu0 0.0
        %1891 = vmatpush1.msra.mxu0 0.0
        %1892 = vmatprep.subr.mxu0 0.0
        %1893 = vmatpush1.msra.mxu0 0.0
        %1894 = vmatprep.subr.mxu0 0.0
        %1895 = vmatpush1.msra.mxu0 0.0
        %1896 = vmatprep.subr.mxu0 0.0
        %1897 = vmatpush1.msra.mxu0 0.0
        %1898 = vmatprep.subr.mxu0 0.0
        %1899 = vmatpush1.msra.mxu0 0.0
        %1900 = vmatprep.subr.mxu0 0.0
        %1901 = vmatpush1.msra.mxu0 0.0
        %1902 = vmatprep.subr.mxu0 0.0
        %1903 = vmatpush1.msra.mxu0 0.0
        %1904 = vmatprep.subr.mxu0 0.0
        %1905 = vmatpush1.msra.mxu0 0.0
        %1906 = vmatprep.subr.mxu0 0.0
        %1907 = vmatpush1.msra.mxu0 0.0
        %1908 = vmatprep.subr.mxu0 0.0
        %1909 = vmatpush1.msra.mxu0 0.0
        %1910 = vmatprep.subr.mxu0 0.0
        %1911 = vmatpush1.msra.mxu0 0.0
        %1912 = vmatprep.subr.mxu0 0.0
        %1913 = vmatpush1.msra.mxu0 0.0
        %1914 = vmatprep.subr.mxu0 0.0
        %1915 = vmatpush1.msra.mxu0 0.0
        %1916 = vmatprep.subr.mxu0 0.0
        %1917 = vmatpush1.msra.mxu0 0.0
        %1918 = vmatprep.subr.mxu0 0.0
        %1919 = vmatpush1.msra.mxu0 0.0
        %1920 = vmatprep.subr.mxu0 0.0
        %1921 = vmatpush1.msra.mxu0 0.0
        %1922 = vmatprep.subr.mxu0 0.0
        %1923 = vmatpush1.msra.mxu0 0.0
        %1924 = vmatprep.subr.mxu0 0.0
        %1925 = vmatpush1.msra.mxu0 0.0
        %1926 = vmatprep.subr.mxu0 0.0
        %1927 = vmatpush1.msra.mxu0 0.0
        %1928 = vmatprep.subr.mxu0 0.0
        %1929 = vmatpush1.msra.mxu0 0.0
        %1930 = vmatprep.subr.mxu0 0.0
        %1931 = vmatpush1.msra.mxu0 0.0
        %1932 = vmatprep.subr.mxu0 0.0
        %1933 = vmatpush1.msra.mxu0 0.0
        %1934 = vmatprep.subr.mxu0 0.0
        %1935 = vmatpush1.msra.mxu0 0.0
        %1936 = vmatprep.subr.mxu0 0.0
        %1937 = vmatpush1.msra.mxu0 0.0
        %1938 = vmatprep.subr.mxu0 0.0
        %1939 = vmatpush1.msra.mxu0 0.0
        %1940 = vmatprep.subr.mxu0 0.0
        %1941 = vmatpush1.msra.mxu0 0.0
        %1942 = vmatprep.subr.mxu0 0.0
        %1943 = vmatpush1.msra.mxu0 0.0
        %1944 = vmatprep.subr.mxu0 0.0
        %1945 = vmatpush1.msra.mxu0 0.0
        %1946 = vmatprep.subr.mxu0 0.0
        %1947 = vmatpush1.msra.mxu0 0.0
        %1948 = vmatprep.subr.mxu0 0.0
        %1949 = vmatpush1.msra.mxu0 0.0
        %1950 = vmatprep.subr.mxu0 0.0
        %1951 = vmatpush1.msra.mxu0 0.0
        %1952 = vmatprep.mubr.f32.mxu0 0.0
        %1953 = vmatmul.mubr.f32.gmra.mrb[0].mxu0 %v1883
        %v1954 = vpop.f32.mrb[0].mxu0
        %v1955 = vadd.f32 0.0, %v1954
        %v1956 = vpop.f32.mrb[0].mxu0
        %1957 = vdwg.mxu0
        %v1959 = vsel %vm1728, %v1715, 0
        %v1962 = vsel %vm1732, %v305, 0
        %1964 = vmatprep.subr.mxu0 0.0
        %1965 = vmatpush1.msra.mxu0 %v1962
        %1966 = vmatprep.subr.mxu0 0.0
        %1967 = vmatpush1.msra.mxu0 0.0
        %1968 = vmatprep.subr.mxu0 0.0
        %1969 = vmatpush1.msra.mxu0 0.0
        %1970 = vmatprep.subr.mxu0 0.0
        %1971 = vmatpush1.msra.mxu0 0.0
        %1972 = vmatprep.subr.mxu0 0.0
        %1973 = vmatpush1.msra.mxu0 0.0
        %1974 = vmatprep.subr.mxu0 0.0
        %1975 = vmatpush1.msra.mxu0 0.0
        %1976 = vmatprep.subr.mxu0 0.0
        %1977 = vmatpush1.msra.mxu0 0.0
        %1978 = vmatprep.subr.mxu0 0.0
        %1979 = vmatpush1.msra.mxu0 0.0
        %1980 = vmatprep.subr.mxu0 0.0
        %1981 = vmatpush1.msra.mxu0 0.0
        %1982 = vmatprep.subr.mxu0 0.0
        %1983 = vmatpush1.msra.mxu0 0.0
        %1984 = vmatprep.subr.mxu0 0.0
        %1985 = vmatpush1.msra.mxu0 0.0
        %1986 = vmatprep.subr.mxu0 0.0
        %1987 = vmatpush1.msra.mxu0 0.0
        %1988 = vmatprep.subr.mxu0 0.0
        %1989 = vmatpush1.msra.mxu0 0.0
        %1990 = vmatprep.subr.mxu0 0.0
        %1991 = vmatpush1.msra.mxu0 0.0
        %1992 = vmatprep.subr.mxu0 0.0
        %1993 = vmatpush1.msra.mxu0 0.0
        %1994 = vmatprep.subr.mxu0 0.0
        %1995 = vmatpush1.msra.mxu0 0.0
        %1996 = vmatprep.subr.mxu0 0.0
        %1997 = vmatpush1.msra.mxu0 0.0
        %1998 = vmatprep.subr.mxu0 0.0
        %1999 = vmatpush1.msra.mxu0 0.0
        %2000 = vmatprep.subr.mxu0 0.0
        %2001 = vmatpush1.msra.mxu0 0.0
        %2002 = vmatprep.subr.mxu0 0.0
        %2003 = vmatpush1.msra.mxu0 0.0
        %2004 = vmatprep.subr.mxu0 0.0
        %2005 = vmatpush1.msra.mxu0 0.0
        %2006 = vmatprep.subr.mxu0 0.0
        %2007 = vmatpush1.msra.mxu0 0.0
        %2008 = vmatprep.subr.mxu0 0.0
        %2009 = vmatpush1.msra.mxu0 0.0
        %2010 = vmatprep.subr.mxu0 0.0
        %2011 = vmatpush1.msra.mxu0 0.0
        %2012 = vmatprep.subr.mxu0 0.0
        %2013 = vmatpush1.msra.mxu0 0.0
        %2014 = vmatprep.subr.mxu0 0.0
        %2015 = vmatpush1.msra.mxu0 0.0
        %2016 = vmatprep.subr.mxu0 0.0
        %2017 = vmatpush1.msra.mxu0 0.0
        %2018 = vmatprep.subr.mxu0 0.0
        %2019 = vmatpush1.msra.mxu0 0.0
        %2020 = vmatprep.subr.mxu0 0.0
        %2021 = vmatpush1.msra.mxu0 0.0
        %2022 = vmatprep.subr.mxu0 0.0
        %2023 = vmatpush1.msra.mxu0 0.0
        %2024 = vmatprep.subr.mxu0 0.0
        %2025 = vmatpush1.msra.mxu0 0.0
        %2026 = vmatprep.subr.mxu0 0.0
        %2027 = vmatpush1.msra.mxu0 0.0
        %2028 = vmatprep.mubr.f32.mxu0 0.0
        %2029 = vmatmul.mubr.f32.gmra.mrb[0].mxu0 %v1959
        %v2030 = vpop.f32.mrb[0].mxu0
        %v2031 = vadd.f32 0.0, %v2030
        %v2032 = vpop.f32.mrb[0].mxu0
        %2033 = vdwg.mxu0
        %v2035 = vsel %vm1728, %v1716, 0
        %v2038 = vsel %vm1732, %v306, 0
        %2040 = vmatprep.subr.mxu0 0.0
        %2041 = vmatpush1.msra.mxu0 %v2038
        %2042 = vmatprep.subr.mxu0 0.0
        %2043 = vmatpush1.msra.mxu0 0.0
        %2044 = vmatprep.subr.mxu0 0.0
        %2045 = vmatpush1.msra.mxu0 0.0
        %2046 = vmatprep.subr.mxu0 0.0
        %2047 = vmatpush1.msra.mxu0 0.0
        %2048 = vmatprep.subr.mxu0 0.0
        %2049 = vmatpush1.msra.mxu0 0.0
        %2050 = vmatprep.subr.mxu0 0.0
        %2051 = vmatpush1.msra.mxu0 0.0
        %2052 = vmatprep.subr.mxu0 0.0
        %2053 = vmatpush1.msra.mxu0 0.0
        %2054 = vmatprep.subr.mxu0 0.0
        %2055 = vmatpush1.msra.mxu0 0.0
        %2056 = vmatprep.subr.mxu0 0.0
        %2057 = vmatpush1.msra.mxu0 0.0
        %2058 = vmatprep.subr.mxu0 0.0
        %2059 = vmatpush1.msra.mxu0 0.0
        %2060 = vmatprep.subr.mxu0 0.0
        %2061 = vmatpush1.msra.mxu0 0.0
        %2062 = vmatprep.subr.mxu0 0.0
        %2063 = vmatpush1.msra.mxu0 0.0
        %2064 = vmatprep.subr.mxu0 0.0
        %2065 = vmatpush1.msra.mxu0 0.0
        %2066 = vmatprep.subr.mxu0 0.0
        %2067 = vmatpush1.msra.mxu0 0.0
        %2068 = vmatprep.subr.mxu0 0.0
        %2069 = vmatpush1.msra.mxu0 0.0
        %2070 = vmatprep.subr.mxu0 0.0
        %2071 = vmatpush1.msra.mxu0 0.0
        %2072 = vmatprep.subr.mxu0 0.0
        %2073 = vmatpush1.msra.mxu0 0.0
        %2074 = vmatprep.subr.mxu0 0.0
        %2075 = vmatpush1.msra.mxu0 0.0
        %2076 = vmatprep.subr.mxu0 0.0
        %2077 = vmatpush1.msra.mxu0 0.0
        %2078 = vmatprep.subr.mxu0 0.0
        %2079 = vmatpush1.msra.mxu0 0.0
        %2080 = vmatprep.subr.mxu0 0.0
        %2081 = vmatpush1.msra.mxu0 0.0
        %2082 = vmatprep.subr.mxu0 0.0
        %2083 = vmatpush1.msra.mxu0 0.0
        %2084 = vmatprep.subr.mxu0 0.0
        %2085 = vmatpush1.msra.mxu0 0.0
        %2086 = vmatprep.subr.mxu0 0.0
        %2087 = vmatpush1.msra.mxu0 0.0
        %2088 = vmatprep.subr.mxu0 0.0
        %2089 = vmatpush1.msra.mxu0 0.0
        %2090 = vmatprep.subr.mxu0 0.0
        %2091 = vmatpush1.msra.mxu0 0.0
        %2092 = vmatprep.subr.mxu0 0.0
        %2093 = vmatpush1.msra.mxu0 0.0
        %2094 = vmatprep.subr.mxu0 0.0
        %2095 = vmatpush1.msra.mxu0 0.0
        %2096 = vmatprep.subr.mxu0 0.0
        %2097 = vmatpush1.msra.mxu0 0.0
        %2098 = vmatprep.subr.mxu0 0.0
        %2099 = vmatpush1.msra.mxu0 0.0
        %2100 = vmatprep.subr.mxu0 0.0
        %2101 = vmatpush1.msra.mxu0 0.0
        %2102 = vmatprep.subr.mxu0 0.0
        %2103 = vmatpush1.msra.mxu0 0.0
        %2104 = vmatprep.mubr.f32.mxu0 0.0
        %2105 = vmatmul.mubr.f32.gmra.mrb[0].mxu0 %v2035
        %v2106 = vpop.f32.mrb[0].mxu0
        %v2107 = vadd.f32 0.0, %v2106
        %v2108 = vpop.f32.mrb[0].mxu0
        %2109 = vdwg.mxu0
        %v2111 = vsel %vm1728, %v1717, 0
        %v2114 = vsel %vm1732, %v307, 0
        %2116 = vmatprep.subr.mxu0 0.0
        %2117 = vmatpush1.msra.mxu0 %v2114
        %2118 = vmatprep.subr.mxu0 0.0
        %2119 = vmatpush1.msra.mxu0 0.0
        %2120 = vmatprep.subr.mxu0 0.0
        %2121 = vmatpush1.msra.mxu0 0.0
        %2122 = vmatprep.subr.mxu0 0.0
        %2123 = vmatpush1.msra.mxu0 0.0
        %2124 = vmatprep.subr.mxu0 0.0
        %2125 = vmatpush1.msra.mxu0 0.0
        %2126 = vmatprep.subr.mxu0 0.0
        %2127 = vmatpush1.msra.mxu0 0.0
        %2128 = vmatprep.subr.mxu0 0.0
        %2129 = vmatpush1.msra.mxu0 0.0
        %2130 = vmatprep.subr.mxu0 0.0
        %2131 = vmatpush1.msra.mxu0 0.0
        %2132 = vmatprep.subr.mxu0 0.0
        %2133 = vmatpush1.msra.mxu0 0.0
        %2134 = vmatprep.subr.mxu0 0.0
        %2135 = vmatpush1.msra.mxu0 0.0
        %2136 = vmatprep.subr.mxu0 0.0
        %2137 = vmatpush1.msra.mxu0 0.0
        %2138 = vmatprep.subr.mxu0 0.0
        %2139 = vmatpush1.msra.mxu0 0.0
        %2140 = vmatprep.subr.mxu0 0.0
        %2141 = vmatpush1.msra.mxu0 0.0
        %2142 = vmatprep.subr.mxu0 0.0
        %2143 = vmatpush1.msra.mxu0 0.0
        %2144 = vmatprep.subr.mxu0 0.0
        %2145 = vmatpush1.msra.mxu0 0.0
        %2146 = vmatprep.subr.mxu0 0.0
        %2147 = vmatpush1.msra.mxu0 0.0
        %2148 = vmatprep.subr.mxu0 0.0
        %2149 = vmatpush1.msra.mxu0 0.0
        %2150 = vmatprep.subr.mxu0 0.0
        %2151 = vmatpush1.msra.mxu0 0.0
        %2152 = vmatprep.subr.mxu0 0.0
        %2153 = vmatpush1.msra.mxu0 0.0
        %2154 = vmatprep.subr.mxu0 0.0
        %2155 = vmatpush1.msra.mxu0 0.0
        %2156 = vmatprep.subr.mxu0 0.0
        %2157 = vmatpush1.msra.mxu0 0.0
        %2158 = vmatprep.subr.mxu0 0.0
        %2159 = vmatpush1.msra.mxu0 0.0
        %2160 = vmatprep.subr.mxu0 0.0
        %2161 = vmatpush1.msra.mxu0 0.0
        %2162 = vmatprep.subr.mxu0 0.0
        %2163 = vmatpush1.msra.mxu0 0.0
        %2164 = vmatprep.subr.mxu0 0.0
        %2165 = vmatpush1.msra.mxu0 0.0
        %2166 = vmatprep.subr.mxu0 0.0
        %2167 = vmatpush1.msra.mxu0 0.0
        %2168 = vmatprep.subr.mxu0 0.0
        %2169 = vmatpush1.msra.mxu0 0.0
        %2170 = vmatprep.subr.mxu0 0.0
        %2171 = vmatpush1.msra.mxu0 0.0
        %2172 = vmatprep.subr.mxu0 0.0
        %2173 = vmatpush1.msra.mxu0 0.0
        %2174 = vmatprep.subr.mxu0 0.0
        %2175 = vmatpush1.msra.mxu0 0.0
        %2176 = vmatprep.subr.mxu0 0.0
        %2177 = vmatpush1.msra.mxu0 0.0
        %2178 = vmatprep.subr.mxu0 0.0
        %2179 = vmatpush1.msra.mxu0 0.0
        %2180 = vmatprep.mubr.f32.mxu0 0.0
        %2181 = vmatmul.mubr.f32.gmra.mrb[0].mxu0 %v2111
        %v2182 = vpop.f32.mrb[0].mxu0
        %v2183 = vadd.f32 0.0, %v2182
        %v2184 = vpop.f32.mrb[0].mxu0
        %2185 = vdwg.mxu0
        %v2187 = vsel %vm1728, %v1718, 0
        %v2190 = vsel %vm1732, %v308, 0
        %2192 = vmatprep.subr.mxu0 0.0
        %2193 = vmatpush1.msra.mxu0 %v2190
        %2194 = vmatprep.subr.mxu0 0.0
        %2195 = vmatpush1.msra.mxu0 0.0
        %2196 = vmatprep.subr.mxu0 0.0
        %2197 = vmatpush1.msra.mxu0 0.0
        %2198 = vmatprep.subr.mxu0 0.0
        %2199 = vmatpush1.msra.mxu0 0.0
        %2200 = vmatprep.subr.mxu0 0.0
        %2201 = vmatpush1.msra.mxu0 0.0
        %2202 = vmatprep.subr.mxu0 0.0
        %2203 = vmatpush1.msra.mxu0 0.0
        %2204 = vmatprep.subr.mxu0 0.0
        %2205 = vmatpush1.msra.mxu0 0.0
        %2206 = vmatprep.subr.mxu0 0.0
        %2207 = vmatpush1.msra.mxu0 0.0
        %2208 = vmatprep.subr.mxu0 0.0
        %2209 = vmatpush1.msra.mxu0 0.0
        %2210 = vmatprep.subr.mxu0 0.0
        %2211 = vmatpush1.msra.mxu0 0.0
        %2212 = vmatprep.subr.mxu0 0.0
        %2213 = vmatpush1.msra.mxu0 0.0
        %2214 = vmatprep.subr.mxu0 0.0
        %2215 = vmatpush1.msra.mxu0 0.0
        %2216 = vmatprep.subr.mxu0 0.0
        %2217 = vmatpush1.msra.mxu0 0.0
        %2218 = vmatprep.subr.mxu0 0.0
        %2219 = vmatpush1.msra.mxu0 0.0
        %2220 = vmatprep.subr.mxu0 0.0
        %2221 = vmatpush1.msra.mxu0 0.0
        %2222 = vmatprep.subr.mxu0 0.0
        %2223 = vmatpush1.msra.mxu0 0.0
        %2224 = vmatprep.subr.mxu0 0.0
        %2225 = vmatpush1.msra.mxu0 0.0
        %2226 = vmatprep.subr.mxu0 0.0
        %2227 = vmatpush1.msra.mxu0 0.0
        %2228 = vmatprep.subr.mxu0 0.0
        %2229 = vmatpush1.msra.mxu0 0.0
        %2230 = vmatprep.subr.mxu0 0.0
        %2231 = vmatpush1.msra.mxu0 0.0
        %2232 = vmatprep.subr.mxu0 0.0
        %2233 = vmatpush1.msra.mxu0 0.0
        %2234 = vmatprep.subr.mxu0 0.0
        %2235 = vmatpush1.msra.mxu0 0.0
        %2236 = vmatprep.subr.mxu0 0.0
        %2237 = vmatpush1.msra.mxu0 0.0
        %2238 = vmatprep.subr.mxu0 0.0
        %2239 = vmatpush1.msra.mxu0 0.0
        %2240 = vmatprep.subr.mxu0 0.0
        %2241 = vmatpush1.msra.mxu0 0.0
        %2242 = vmatprep.subr.mxu0 0.0
        %2243 = vmatpush1.msra.mxu0 0.0
        %2244 = vmatprep.subr.mxu0 0.0
        %2245 = vmatpush1.msra.mxu0 0.0
        %2246 = vmatprep.subr.mxu0 0.0
        %2247 = vmatpush1.msra.mxu0 0.0
        %2248 = vmatprep.subr.mxu0 0.0
        %2249 = vmatpush1.msra.mxu0 0.0
        %2250 = vmatprep.subr.mxu0 0.0
        %2251 = vmatpush1.msra.mxu0 0.0
        %2252 = vmatprep.subr.mxu0 0.0
        %2253 = vmatpush1.msra.mxu0 0.0
        %2254 = vmatprep.subr.mxu0 0.0
        %2255 = vmatpush1.msra.mxu0 0.0
        %2256 = vmatprep.mubr.f32.mxu0 0.0
        %2257 = vmatmul.mubr.f32.gmra.mrb[0].mxu0 %v2187
        %v2258 = vpop.f32.mrb[0].mxu0
        %v2259 = vadd.f32 0.0, %v2258
        %v2260 = vpop.f32.mrb[0].mxu0
        %2261 = vdwg.mxu0
        %v2263 = vsel %vm1728, %v1719, 0
        %v2266 = vsel %vm1732, %v309, 0
        %2268 = vmatprep.subr.mxu0 0.0
        %2269 = vmatpush1.msra.mxu0 %v2266
        %2270 = vmatprep.subr.mxu0 0.0
        %2271 = vmatpush1.msra.mxu0 0.0
        %2272 = vmatprep.subr.mxu0 0.0
        %2273 = vmatpush1.msra.mxu0 0.0
        %2274 = vmatprep.subr.mxu0 0.0
        %2275 = vmatpush1.msra.mxu0 0.0
        %2276 = vmatprep.subr.mxu0 0.0
        %2277 = vmatpush1.msra.mxu0 0.0
        %2278 = vmatprep.subr.mxu0 0.0
        %2279 = vmatpush1.msra.mxu0 0.0
        %2280 = vmatprep.subr.mxu0 0.0
        %2281 = vmatpush1.msra.mxu0 0.0
        %2282 = vmatprep.subr.mxu0 0.0
        %2283 = vmatpush1.msra.mxu0 0.0
        %2284 = vmatprep.subr.mxu0 0.0
        %2285 = vmatpush1.msra.mxu0 0.0
        %2286 = vmatprep.subr.mxu0 0.0
        %2287 = vmatpush1.msra.mxu0 0.0
        %2288 = vmatprep.subr.mxu0 0.0
        %2289 = vmatpush1.msra.mxu0 0.0
        %2290 = vmatprep.subr.mxu0 0.0
        %2291 = vmatpush1.msra.mxu0 0.0
        %2292 = vmatprep.subr.mxu0 0.0
        %2293 = vmatpush1.msra.mxu0 0.0
        %2294 = vmatprep.subr.mxu0 0.0
        %2295 = vmatpush1.msra.mxu0 0.0
        %2296 = vmatprep.subr.mxu0 0.0
        %2297 = vmatpush1.msra.mxu0 0.0
        %2298 = vmatprep.subr.mxu0 0.0
        %2299 = vmatpush1.msra.mxu0 0.0
        %2300 = vmatprep.subr.mxu0 0.0
        %2301 = vmatpush1.msra.mxu0 0.0
        %2302 = vmatprep.subr.mxu0 0.0
        %2303 = vmatpush1.msra.mxu0 0.0
        %2304 = vmatprep.subr.mxu0 0.0
        %2305 = vmatpush1.msra.mxu0 0.0
        %2306 = vmatprep.subr.mxu0 0.0
        %2307 = vmatpush1.msra.mxu0 0.0
        %2308 = vmatprep.subr.mxu0 0.0
        %2309 = vmatpush1.msra.mxu0 0.0
        %2310 = vmatprep.subr.mxu0 0.0
        %2311 = vmatpush1.msra.mxu0 0.0
        %2312 = vmatprep.subr.mxu0 0.0
        %2313 = vmatpush1.msra.mxu0 0.0
        %2314 = vmatprep.subr.mxu0 0.0
        %2315 = vmatpush1.msra.mxu0 0.0
        %2316 = vmatprep.subr.mxu0 0.0
        %2317 = vmatpush1.msra.mxu0 0.0
        %2318 = vmatprep.subr.mxu0 0.0
        %2319 = vmatpush1.msra.mxu0 0.0
        %2320 = vmatprep.subr.mxu0 0.0
        %2321 = vmatpush1.msra.mxu0 0.0
        %2322 = vmatprep.subr.mxu0 0.0
        %2323 = vmatpush1.msra.mxu0 0.0
        %2324 = vmatprep.subr.mxu0 0.0
        %2325 = vmatpush1.msra.mxu0 0.0
        %2326 = vmatprep.subr.mxu0 0.0
        %2327 = vmatpush1.msra.mxu0 0.0
        %2328 = vmatprep.subr.mxu0 0.0
        %2329 = vmatpush1.msra.mxu0 0.0
        %2330 = vmatprep.subr.mxu0 0.0
        %2331 = vmatpush1.msra.mxu0 0.0
        %2332 = vmatprep.mubr.f32.mxu0 0.0
        %2333 = vmatmul.mubr.f32.gmra.mrb[0].mxu0 %v2263
        %v2334 = vpop.f32.mrb[0].mxu0
        %v2335 = vadd.f32 0.0, %v2334
        %v2336 = vpop.f32.mrb[0].mxu0
        %2337 = vdwg.mxu0
        %v2339 = vsel %vm1728, %v1720, 0
        %v2342 = vsel %vm1732, %v310, 0
        %2344 = vmatprep.subr.mxu0 0.0
        %2345 = vmatpush1.msra.mxu0 %v2342
        %2346 = vmatprep.subr.mxu0 0.0
        %2347 = vmatpush1.msra.mxu0 0.0
        %2348 = vmatprep.subr.mxu0 0.0
        %2349 = vmatpush1.msra.mxu0 0.0
        %2350 = vmatprep.subr.mxu0 0.0
        %2351 = vmatpush1.msra.mxu0 0.0
        %2352 = vmatprep.subr.mxu0 0.0
        %2353 = vmatpush1.msra.mxu0 0.0
        %2354 = vmatprep.subr.mxu0 0.0
        %2355 = vmatpush1.msra.mxu0 0.0
        %2356 = vmatprep.subr.mxu0 0.0
        %2357 = vmatpush1.msra.mxu0 0.0
        %2358 = vmatprep.subr.mxu0 0.0
        %2359 = vmatpush1.msra.mxu0 0.0
        %2360 = vmatprep.subr.mxu0 0.0
        %2361 = vmatpush1.msra.mxu0 0.0
        %2362 = vmatprep.subr.mxu0 0.0
        %2363 = vmatpush1.msra.mxu0 0.0
        %2364 = vmatprep.subr.mxu0 0.0
        %2365 = vmatpush1.msra.mxu0 0.0
        %2366 = vmatprep.subr.mxu0 0.0
        %2367 = vmatpush1.msra.mxu0 0.0
        %2368 = vmatprep.subr.mxu0 0.0
        %2369 = vmatpush1.msra.mxu0 0.0
        %2370 = vmatprep.subr.mxu0 0.0
        %2371 = vmatpush1.msra.mxu0 0.0
        %2372 = vmatprep.subr.mxu0 0.0
        %2373 = vmatpush1.msra.mxu0 0.0
        %2374 = vmatprep.subr.mxu0 0.0
        %2375 = vmatpush1.msra.mxu0 0.0
        %2376 = vmatprep.subr.mxu0 0.0
        %2377 = vmatpush1.msra.mxu0 0.0
        %2378 = vmatprep.subr.mxu0 0.0
        %2379 = vmatpush1.msra.mxu0 0.0
        %2380 = vmatprep.subr.mxu0 0.0
        %2381 = vmatpush1.msra.mxu0 0.0
        %2382 = vmatprep.subr.mxu0 0.0
        %2383 = vmatpush1.msra.mxu0 0.0
        %2384 = vmatprep.subr.mxu0 0.0
        %2385 = vmatpush1.msra.mxu0 0.0
        %2386 = vmatprep.subr.mxu0 0.0
        %2387 = vmatpush1.msra.mxu0 0.0
        %2388 = vmatprep.subr.mxu0 0.0
        %2389 = vmatpush1.msra.mxu0 0.0
        %2390 = vmatprep.subr.mxu0 0.0
        %2391 = vmatpush1.msra.mxu0 0.0
        %2392 = vmatprep.subr.mxu0 0.0
        %2393 = vmatpush1.msra.mxu0 0.0
        %2394 = vmatprep.subr.mxu0 0.0
        %2395 = vmatpush1.msra.mxu0 0.0
        %2396 = vmatprep.subr.mxu0 0.0
        %2397 = vmatpush1.msra.mxu0 0.0
        %2398 = vmatprep.subr.mxu0 0.0
        %2399 = vmatpush1.msra.mxu0 0.0
        %2400 = vmatprep.subr.mxu0 0.0
        %2401 = vmatpush1.msra.mxu0 0.0
        %2402 = vmatprep.subr.mxu0 0.0
        %2403 = vmatpush1.msra.mxu0 0.0
        %2404 = vmatprep.subr.mxu0 0.0
        %2405 = vmatpush1.msra.mxu0 0.0
        %2406 = vmatprep.subr.mxu0 0.0
        %2407 = vmatpush1.msra.mxu0 0.0
        %2408 = vmatprep.mubr.f32.mxu0 0.0
        %2409 = vmatmul.mubr.f32.gmra.mrb[0].mxu0 %v2339
        %v2410 = vpop.f32.mrb[0].mxu0
        %v2411 = vadd.f32 0.0, %v2410
        %v2412 = vpop.f32.mrb[0].mxu0
        %2413 = vdwg.mxu0
        %v2415 = vsel %vm1728, %v1721, 0
        %v2418 = vsel %vm1732, %v311, 0
        %2420 = vmatprep.subr.mxu0 0.0
        %2421 = vmatpush1.msra.mxu0 %v2418
        %2422 = vmatprep.subr.mxu0 0.0
        %2423 = vmatpush1.msra.mxu0 0.0
        %2424 = vmatprep.subr.mxu0 0.0
        %2425 = vmatpush1.msra.mxu0 0.0
        %2426 = vmatprep.subr.mxu0 0.0
        %2427 = vmatpush1.msra.mxu0 0.0
        %2428 = vmatprep.subr.mxu0 0.0
        %2429 = vmatpush1.msra.mxu0 0.0
        %2430 = vmatprep.subr.mxu0 0.0
        %2431 = vmatpush1.msra.mxu0 0.0
        %2432 = vmatprep.subr.mxu0 0.0
        %2433 = vmatpush1.msra.mxu0 0.0
        %2434 = vmatprep.subr.mxu0 0.0
        %2435 = vmatpush1.msra.mxu0 0.0
        %2436 = vmatprep.subr.mxu0 0.0
        %2437 = vmatpush1.msra.mxu0 0.0
        %2438 = vmatprep.subr.mxu0 0.0
        %2439 = vmatpush1.msra.mxu0 0.0
        %2440 = vmatprep.subr.mxu0 0.0
        %2441 = vmatpush1.msra.mxu0 0.0
        %2442 = vmatprep.subr.mxu0 0.0
        %2443 = vmatpush1.msra.mxu0 0.0
        %2444 = vmatprep.subr.mxu0 0.0
        %2445 = vmatpush1.msra.mxu0 0.0
        %2446 = vmatprep.subr.mxu0 0.0
        %2447 = vmatpush1.msra.mxu0 0.0
        %2448 = vmatprep.subr.mxu0 0.0
        %2449 = vmatpush1.msra.mxu0 0.0
        %2450 = vmatprep.subr.mxu0 0.0
        %2451 = vmatpush1.msra.mxu0 0.0
        %2452 = vmatprep.subr.mxu0 0.0
        %2453 = vmatpush1.msra.mxu0 0.0
        %2454 = vmatprep.subr.mxu0 0.0
        %2455 = vmatpush1.msra.mxu0 0.0
        %2456 = vmatprep.subr.mxu0 0.0
        %2457 = vmatpush1.msra.mxu0 0.0
        %2458 = vmatprep.subr.mxu0 0.0
        %2459 = vmatpush1.msra.mxu0 0.0
        %2460 = vmatprep.subr.mxu0 0.0
        %2461 = vmatpush1.msra.mxu0 0.0
        %2462 = vmatprep.subr.mxu0 0.0
        %2463 = vmatpush1.msra.mxu0 0.0
        %2464 = vmatprep.subr.mxu0 0.0
        %2465 = vmatpush1.msra.mxu0 0.0
        %2466 = vmatprep.subr.mxu0 0.0
        %2467 = vmatpush1.msra.mxu0 0.0
        %2468 = vmatprep.subr.mxu0 0.0
        %2469 = vmatpush1.msra.mxu0 0.0
        %2470 = vmatprep.subr.mxu0 0.0
        %2471 = vmatpush1.msra.mxu0 0.0
        %2472 = vmatprep.subr.mxu0 0.0
        %2473 = vmatpush1.msra.mxu0 0.0
        %2474 = vmatprep.subr.mxu0 0.0
        %2475 = vmatpush1.msra.mxu0 0.0
        %2476 = vmatprep.subr.mxu0 0.0
        %2477 = vmatpush1.msra.mxu0 0.0
        %2478 = vmatprep.subr.mxu0 0.0
        %2479 = vmatpush1.msra.mxu0 0.0
        %2480 = vmatprep.subr.mxu0 0.0
        %2481 = vmatpush1.msra.mxu0 0.0
        %2482 = vmatprep.subr.mxu0 0.0
        %2483 = vmatpush1.msra.mxu0 0.0
        %2484 = vmatprep.mubr.f32.mxu0 0.0
        %2485 = vmatmul.mubr.f32.gmra.mrb[0].mxu0 %v2415
        %v2486 = vpop.f32.mrb[0].mxu0
        %v2487 = vadd.f32 0.0, %v2486
        %v2488 = vpop.f32.mrb[0].mxu0
        %2489 = vdwg.mxu0
        %v2491 = vsel %vm1728, %v1722, 0
        %v2494 = vsel %vm1732, %v312, 0
        %2496 = vmatprep.subr.mxu0 0.0
        %2497 = vmatpush1.msra.mxu0 %v2494
        %2498 = vmatprep.subr.mxu0 0.0
        %2499 = vmatpush1.msra.mxu0 0.0
        %2500 = vmatprep.subr.mxu0 0.0
        %2501 = vmatpush1.msra.mxu0 0.0
        %2502 = vmatprep.subr.mxu0 0.0
        %2503 = vmatpush1.msra.mxu0 0.0
        %2504 = vmatprep.subr.mxu0 0.0
        %2505 = vmatpush1.msra.mxu0 0.0
        %2506 = vmatprep.subr.mxu0 0.0
        %2507 = vmatpush1.msra.mxu0 0.0
        %2508 = vmatprep.subr.mxu0 0.0
        %2509 = vmatpush1.msra.mxu0 0.0
        %2510 = vmatprep.subr.mxu0 0.0
        %2511 = vmatpush1.msra.mxu0 0.0
        %2512 = vmatprep.subr.mxu0 0.0
        %2513 = vmatpush1.msra.mxu0 0.0
        %2514 = vmatprep.subr.mxu0 0.0
        %2515 = vmatpush1.msra.mxu0 0.0
        %2516 = vmatprep.subr.mxu0 0.0
        %2517 = vmatpush1.msra.mxu0 0.0
        %2518 = vmatprep.subr.mxu0 0.0
        %2519 = vmatpush1.msra.mxu0 0.0
        %2520 = vmatprep.subr.mxu0 0.0
        %2521 = vmatpush1.msra.mxu0 0.0
        %2522 = vmatprep.subr.mxu0 0.0
        %2523 = vmatpush1.msra.mxu0 0.0
        %2524 = vmatprep.subr.mxu0 0.0
        %2525 = vmatpush1.msra.mxu0 0.0
        %2526 = vmatprep.subr.mxu0 0.0
        %2527 = vmatpush1.msra.mxu0 0.0
        %2528 = vmatprep.subr.mxu0 0.0
        %2529 = vmatpush1.msra.mxu0 0.0
        %2530 = vmatprep.subr.mxu0 0.0
        %2531 = vmatpush1.msra.mxu0 0.0
        %2532 = vmatprep.subr.mxu0 0.0
        %2533 = vmatpush1.msra.mxu0 0.0
        %2534 = vmatprep.subr.mxu0 0.0
        %2535 = vmatpush1.msra.mxu0 0.0
        %2536 = vmatprep.subr.mxu0 0.0
        %2537 = vmatpush1.msra.mxu0 0.0
        %2538 = vmatprep.subr.mxu0 0.0
        %2539 = vmatpush1.msra.mxu0 0.0
        %2540 = vmatprep.subr.mxu0 0.0
        %2541 = vmatpush1.msra.mxu0 0.0
        %2542 = vmatprep.subr.mxu0 0.0
        %2543 = vmatpush1.msra.mxu0 0.0
        %2544 = vmatprep.subr.mxu0 0.0
        %2545 = vmatpush1.msra.mxu0 0.0
        %2546 = vmatprep.subr.mxu0 0.0
        %2547 = vmatpush1.msra.mxu0 0.0
        %2548 = vmatprep.subr.mxu0 0.0
        %2549 = vmatpush1.msra.mxu0 0.0
        %2550 = vmatprep.subr.mxu0 0.0
        %2551 = vmatpush1.msra.mxu0 0.0
        %2552 = vmatprep.subr.mxu0 0.0
        %2553 = vmatpush1.msra.mxu0 0.0
        %2554 = vmatprep.subr.mxu0 0.0
        %2555 = vmatpush1.msra.mxu0 0.0
        %2556 = vmatprep.subr.mxu0 0.0
        %2557 = vmatpush1.msra.mxu0 0.0
        %2558 = vmatprep.subr.mxu0 0.0
        %2559 = vmatpush1.msra.mxu0 0.0
        %2560 = vmatprep.mubr.f32.mxu0 0.0
        %2561 = vmatmul.mubr.f32.gmra.mrb[0].mxu0 %v2491
        %v2562 = vpop.f32.mrb[0].mxu0
        %v2563 = vadd.f32 0.0, %v2562
        %v2564 = vpop.f32.mrb[0].mxu0
        %2565 = vdwg.mxu0
        %v2567 = vsel %vm1728, %v1723, 0
        %v2570 = vsel %vm1732, %v313, 0
        %2572 = vmatprep.subr.mxu0 0.0
        %2573 = vmatpush1.msra.mxu0 %v2570
        %2574 = vmatprep.subr.mxu0 0.0
        %2575 = vmatpush1.msra.mxu0 0.0
        %2576 = vmatprep.subr.mxu0 0.0
        %2577 = vmatpush1.msra.mxu0 0.0
        %2578 = vmatprep.subr.mxu0 0.0
        %2579 = vmatpush1.msra.mxu0 0.0
        %2580 = vmatprep.subr.mxu0 0.0
        %2581 = vmatpush1.msra.mxu0 0.0
        %2582 = vmatprep.subr.mxu0 0.0
        %2583 = vmatpush1.msra.mxu0 0.0
        %2584 = vmatprep.subr.mxu0 0.0
        %2585 = vmatpush1.msra.mxu0 0.0
        %2586 = vmatprep.subr.mxu0 0.0
        %2587 = vmatpush1.msra.mxu0 0.0
        %2588 = vmatprep.subr.mxu0 0.0
        %2589 = vmatpush1.msra.mxu0 0.0
        %2590 = vmatprep.subr.mxu0 0.0
        %2591 = vmatpush1.msra.mxu0 0.0
        %2592 = vmatprep.subr.mxu0 0.0
        %2593 = vmatpush1.msra.mxu0 0.0
        %2594 = vmatprep.subr.mxu0 0.0
        %2595 = vmatpush1.msra.mxu0 0.0
        %2596 = vmatprep.subr.mxu0 0.0
        %2597 = vmatpush1.msra.mxu0 0.0
        %2598 = vmatprep.subr.mxu0 0.0
        %2599 = vmatpush1.msra.mxu0 0.0
        %2600 = vmatprep.subr.mxu0 0.0
        %2601 = vmatpush1.msra.mxu0 0.0
        %2602 = vmatprep.subr.mxu0 0.0
        %2603 = vmatpush1.msra.mxu0 0.0
        %2604 = vmatprep.subr.mxu0 0.0
        %2605 = vmatpush1.msra.mxu0 0.0
        %2606 = vmatprep.subr.mxu0 0.0
        %2607 = vmatpush1.msra.mxu0 0.0
        %2608 = vmatprep.subr.mxu0 0.0
        %2609 = vmatpush1.msra.mxu0 0.0
        %2610 = vmatprep.subr.mxu0 0.0
        %2611 = vmatpush1.msra.mxu0 0.0
        %2612 = vmatprep.subr.mxu0 0.0
        %2613 = vmatpush1.msra.mxu0 0.0
        %2614 = vmatprep.subr.mxu0 0.0
        %2615 = vmatpush1.msra.mxu0 0.0
        %2616 = vmatprep.subr.mxu0 0.0
        %2617 = vmatpush1.msra.mxu0 0.0
        %2618 = vmatprep.subr.mxu0 0.0
        %2619 = vmatpush1.msra.mxu0 0.0
        %2620 = vmatprep.subr.mxu0 0.0
        %2621 = vmatpush1.msra.mxu0 0.0
        %2622 = vmatprep.subr.mxu0 0.0
        %2623 = vmatpush1.msra.mxu0 0.0
        %2624 = vmatprep.subr.mxu0 0.0
        %2625 = vmatpush1.msra.mxu0 0.0
        %2626 = vmatprep.subr.mxu0 0.0
        %2627 = vmatpush1.msra.mxu0 0.0
        %2628 = vmatprep.subr.mxu0 0.0
        %2629 = vmatpush1.msra.mxu0 0.0
        %2630 = vmatprep.subr.mxu0 0.0
        %2631 = vmatpush1.msra.mxu0 0.0
        %2632 = vmatprep.subr.mxu0 0.0
        %2633 = vmatpush1.msra.mxu0 0.0
        %2634 = vmatprep.subr.mxu0 0.0
        %2635 = vmatpush1.msra.mxu0 0.0
        %2636 = vmatprep.mubr.f32.mxu0 0.0
        %2637 = vmatmul.mubr.f32.gmra.mrb[0].mxu0 %v2567
        %v2638 = vpop.f32.mrb[0].mxu0
        %v2639 = vadd.f32 0.0, %v2638
        %v2640 = vpop.f32.mrb[0].mxu0
        %2641 = vdwg.mxu0
        %v2643 = vsel %vm1728, %v1724, 0
        %v2646 = vsel %vm1732, %v314, 0
        %2648 = vmatprep.subr.mxu0 0.0
        %2649 = vmatpush1.msra.mxu0 %v2646
        %2650 = vmatprep.subr.mxu0 0.0
        %2651 = vmatpush1.msra.mxu0 0.0
        %2652 = vmatprep.subr.mxu0 0.0
        %2653 = vmatpush1.msra.mxu0 0.0
        %2654 = vmatprep.subr.mxu0 0.0
        %2655 = vmatpush1.msra.mxu0 0.0
        %2656 = vmatprep.subr.mxu0 0.0
        %2657 = vmatpush1.msra.mxu0 0.0
        %2658 = vmatprep.subr.mxu0 0.0
        %2659 = vmatpush1.msra.mxu0 0.0
        %2660 = vmatprep.subr.mxu0 0.0
        %2661 = vmatpush1.msra.mxu0 0.0
        %2662 = vmatprep.subr.mxu0 0.0
        %2663 = vmatpush1.msra.mxu0 0.0
        %2664 = vmatprep.subr.mxu0 0.0
        %2665 = vmatpush1.msra.mxu0 0.0
        %2666 = vmatprep.subr.mxu0 0.0
        %2667 = vmatpush1.msra.mxu0 0.0
        %2668 = vmatprep.subr.mxu0 0.0
        %2669 = vmatpush1.msra.mxu0 0.0
        %2670 = vmatprep.subr.mxu0 0.0
        %2671 = vmatpush1.msra.mxu0 0.0
        %2672 = vmatprep.subr.mxu0 0.0
        %2673 = vmatpush1.msra.mxu0 0.0
        %2674 = vmatprep.subr.mxu0 0.0
        %2675 = vmatpush1.msra.mxu0 0.0
        %2676 = vmatprep.subr.mxu0 0.0
        %2677 = vmatpush1.msra.mxu0 0.0
        %2678 = vmatprep.subr.mxu0 0.0
        %2679 = vmatpush1.msra.mxu0 0.0
        %2680 = vmatprep.subr.mxu0 0.0
        %2681 = vmatpush1.msra.mxu0 0.0
        %2682 = vmatprep.subr.mxu0 0.0
        %2683 = vmatpush1.msra.mxu0 0.0
        %2684 = vmatprep.subr.mxu0 0.0
        %2685 = vmatpush1.msra.mxu0 0.0
        %2686 = vmatprep.subr.mxu0 0.0
        %2687 = vmatpush1.msra.mxu0 0.0
        %2688 = vmatprep.subr.mxu0 0.0
        %2689 = vmatpush1.msra.mxu0 0.0
        %2690 = vmatprep.subr.mxu0 0.0
        %2691 = vmatpush1.msra.mxu0 0.0
        %2692 = vmatprep.subr.mxu0 0.0
        %2693 = vmatpush1.msra.mxu0 0.0
        %2694 = vmatprep.subr.mxu0 0.0
        %2695 = vmatpush1.msra.mxu0 0.0
        %2696 = vmatprep.subr.mxu0 0.0
        %2697 = vmatpush1.msra.mxu0 0.0
        %2698 = vmatprep.subr.mxu0 0.0
        %2699 = vmatpush1.msra.mxu0 0.0
        %2700 = vmatprep.subr.mxu0 0.0
        %2701 = vmatpush1.msra.mxu0 0.0
        %2702 = vmatprep.subr.mxu0 0.0
        %2703 = vmatpush1.msra.mxu0 0.0
        %2704 = vmatprep.subr.mxu0 0.0
        %2705 = vmatpush1.msra.mxu0 0.0
        %2706 = vmatprep.subr.mxu0 0.0
        %2707 = vmatpush1.msra.mxu0 0.0
        %2708 = vmatprep.subr.mxu0 0.0
        %2709 = vmatpush1.msra.mxu0 0.0
        %2710 = vmatprep.subr.mxu0 0.0
        %2711 = vmatpush1.msra.mxu0 0.0
        %2712 = vmatprep.mubr.f32.mxu0 0.0
        %2713 = vmatmul.mubr.f32.gmra.mrb[0].mxu0 %v2643
        %v2714 = vpop.f32.mrb[0].mxu0
        %v2715 = vadd.f32 0.0, %v2714
        %v2716 = vpop.f32.mrb[0].mxu0
        %2717 = vdwg.mxu0
        %v2719 = vsel %vm1728, %v1725, 0
        %v2722 = vsel %vm1732, %v315, 0
        %2724 = vmatprep.subr.mxu0 0.0
        %2725 = vmatpush1.msra.mxu0 %v2722
        %2726 = vmatprep.subr.mxu0 0.0
        %2727 = vmatpush1.msra.mxu0 0.0
        %2728 = vmatprep.subr.mxu0 0.0
        %2729 = vmatpush1.msra.mxu0 0.0
        %2730 = vmatprep.subr.mxu0 0.0
        %2731 = vmatpush1.msra.mxu0 0.0
        %2732 = vmatprep.subr.mxu0 0.0
        %2733 = vmatpush1.msra.mxu0 0.0
        %2734 = vmatprep.subr.mxu0 0.0
        %2735 = vmatpush1.msra.mxu0 0.0
        %2736 = vmatprep.subr.mxu0 0.0
        %2737 = vmatpush1.msra.mxu0 0.0
        %2738 = vmatprep.subr.mxu0 0.0
        %2739 = vmatpush1.msra.mxu0 0.0
        %2740 = vmatprep.subr.mxu0 0.0
        %2741 = vmatpush1.msra.mxu0 0.0
        %2742 = vmatprep.subr.mxu0 0.0
        %2743 = vmatpush1.msra.mxu0 0.0
        %2744 = vmatprep.subr.mxu0 0.0
        %2745 = vmatpush1.msra.mxu0 0.0
        %2746 = vmatprep.subr.mxu0 0.0
        %2747 = vmatpush1.msra.mxu0 0.0
        %2748 = vmatprep.subr.mxu0 0.0
        %2749 = vmatpush1.msra.mxu0 0.0
        %2750 = vmatprep.subr.mxu0 0.0
        %2751 = vmatpush1.msra.mxu0 0.0
        %2752 = vmatprep.subr.mxu0 0.0
        %2753 = vmatpush1.msra.mxu0 0.0
        %2754 = vmatprep.subr.mxu0 0.0
        %2755 = vmatpush1.msra.mxu0 0.0
        %2756 = vmatprep.subr.mxu0 0.0
        %2757 = vmatpush1.msra.mxu0 0.0
        %2758 = vmatprep.subr.mxu0 0.0
        %2759 = vmatpush1.msra.mxu0 0.0
        %2760 = vmatprep.subr.mxu0 0.0
        %2761 = vmatpush1.msra.mxu0 0.0
        %2762 = vmatprep.subr.mxu0 0.0
        %2763 = vmatpush1.msra.mxu0 0.0
        %2764 = vmatprep.subr.mxu0 0.0
        %2765 = vmatpush1.msra.mxu0 0.0
        %2766 = vmatprep.subr.mxu0 0.0
        %2767 = vmatpush1.msra.mxu0 0.0
        %2768 = vmatprep.subr.mxu0 0.0
        %2769 = vmatpush1.msra.mxu0 0.0
        %2770 = vmatprep.subr.mxu0 0.0
        %2771 = vmatpush1.msra.mxu0 0.0
        %2772 = vmatprep.subr.mxu0 0.0
        %2773 = vmatpush1.msra.mxu0 0.0
        %2774 = vmatprep.subr.mxu0 0.0
        %2775 = vmatpush1.msra.mxu0 0.0
        %2776 = vmatprep.subr.mxu0 0.0
        %2777 = vmatpush1.msra.mxu0 0.0
        %2778 = vmatprep.subr.mxu0 0.0
        %2779 = vmatpush1.msra.mxu0 0.0
        %2780 = vmatprep.subr.mxu0 0.0
        %2781 = vmatpush1.msra.mxu0 0.0
        %2782 = vmatprep.subr.mxu0 0.0
        %2783 = vmatpush1.msra.mxu0 0.0
        %2784 = vmatprep.subr.mxu0 0.0
        %2785 = vmatpush1.msra.mxu0 0.0
        %2786 = vmatprep.subr.mxu0 0.0
        %2787 = vmatpush1.msra.mxu0 0.0
        %2788 = vmatprep.mubr.f32.mxu0 0.0
        %2789 = vmatmul.mubr.f32.gmra.mrb[0].mxu0 %v2719
        %v2790 = vpop.f32.mrb[0].mxu0
        %v2791 = vadd.f32 0.0, %v2790
        %v2792 = vpop.f32.mrb[0].mxu0
        %2793 = vdwg.mxu0
        %v2795 = vsel %vm1728, %v1726, 0
        %v2798 = vsel %vm1732, %v316, 0
        %2800 = vmatprep.subr.mxu0 0.0
        %2801 = vmatpush1.msra.mxu0 %v2798
        %2802 = vmatprep.subr.mxu0 0.0
        %2803 = vmatpush1.msra.mxu0 0.0
        %2804 = vmatprep.subr.mxu0 0.0
        %2805 = vmatpush1.msra.mxu0 0.0
        %2806 = vmatprep.subr.mxu0 0.0
        %2807 = vmatpush1.msra.mxu0 0.0
        %2808 = vmatprep.subr.mxu0 0.0
        %2809 = vmatpush1.msra.mxu0 0.0
        %2810 = vmatprep.subr.mxu0 0.0
        %2811 = vmatpush1.msra.mxu0 0.0
        %2812 = vmatprep.subr.mxu0 0.0
        %2813 = vmatpush1.msra.mxu0 0.0
        %2814 = vmatprep.subr.mxu0 0.0
        %2815 = vmatpush1.msra.mxu0 0.0
        %2816 = vmatprep.subr.mxu0 0.0
        %2817 = vmatpush1.msra.mxu0 0.0
        %2818 = vmatprep.subr.mxu0 0.0
        %2819 = vmatpush1.msra.mxu0 0.0
        %2820 = vmatprep.subr.mxu0 0.0
        %2821 = vmatpush1.msra.mxu0 0.0
        %2822 = vmatprep.subr.mxu0 0.0
        %2823 = vmatpush1.msra.mxu0 0.0
        %2824 = vmatprep.subr.mxu0 0.0
        %2825 = vmatpush1.msra.mxu0 0.0
        %2826 = vmatprep.subr.mxu0 0.0
        %2827 = vmatpush1.msra.mxu0 0.0
        %2828 = vmatprep.subr.mxu0 0.0
        %2829 = vmatpush1.msra.mxu0 0.0
        %2830 = vmatprep.subr.mxu0 0.0
        %2831 = vmatpush1.msra.mxu0 0.0
        %2832 = vmatprep.subr.mxu0 0.0
        %2833 = vmatpush1.msra.mxu0 0.0
        %2834 = vmatprep.subr.mxu0 0.0
        %2835 = vmatpush1.msra.mxu0 0.0
        %2836 = vmatprep.subr.mxu0 0.0
        %2837 = vmatpush1.msra.mxu0 0.0
        %2838 = vmatprep.subr.mxu0 0.0
        %2839 = vmatpush1.msra.mxu0 0.0
        %2840 = vmatprep.subr.mxu0 0.0
        %2841 = vmatpush1.msra.mxu0 0.0
        %2842 = vmatprep.subr.mxu0 0.0
        %2843 = vmatpush1.msra.mxu0 0.0
        %2844 = vmatprep.subr.mxu0 0.0
        %2845 = vmatpush1.msra.mxu0 0.0
        %2846 = vmatprep.subr.mxu0 0.0
        %2847 = vmatpush1.msra.mxu0 0.0
        %2848 = vmatprep.subr.mxu0 0.0
        %2849 = vmatpush1.msra.mxu0 0.0
        %2850 = vmatprep.subr.mxu0 0.0
        %2851 = vmatpush1.msra.mxu0 0.0
        %2852 = vmatprep.subr.mxu0 0.0
        %2853 = vmatpush1.msra.mxu0 0.0
        %2854 = vmatprep.subr.mxu0 0.0
        %2855 = vmatpush1.msra.mxu0 0.0
        %2856 = vmatprep.subr.mxu0 0.0
        %2857 = vmatpush1.msra.mxu0 0.0
        %2858 = vmatprep.subr.mxu0 0.0
        %2859 = vmatpush1.msra.mxu0 0.0
        %2860 = vmatprep.subr.mxu0 0.0
        %2861 = vmatpush1.msra.mxu0 0.0
        %2862 = vmatprep.subr.mxu0 0.0
        %2863 = vmatpush1.msra.mxu0 0.0
        %2864 = vmatprep.mubr.f32.mxu0 0.0
        %2865 = vmatmul.mubr.f32.gmra.mrb[0].mxu0 %v2795
        %v2866 = vpop.f32.mrb[0].mxu0
        %v2867 = vadd.f32 0.0, %v2866
        %v2868 = vpop.f32.mrb[0].mxu0
        %2869 = vdwg.mxu0
        %v2871 = vsel %vm1728, %v1727, 0
        %v2874 = vsel %vm1732, %v317, 0
        %2876 = vmatprep.subr.mxu0 0.0
        %2877 = vmatpush1.msra.mxu0 %v2874
        %2878 = vmatprep.subr.mxu0 0.0
        %2879 = vmatpush1.msra.mxu0 0.0
        %2880 = vmatprep.subr.mxu0 0.0
        %2881 = vmatpush1.msra.mxu0 0.0
        %2882 = vmatprep.subr.mxu0 0.0
        %2883 = vmatpush1.msra.mxu0 0.0
        %2884 = vmatprep.subr.mxu0 0.0
        %2885 = vmatpush1.msra.mxu0 0.0
        %2886 = vmatprep.subr.mxu0 0.0
        %2887 = vmatpush1.msra.mxu0 0.0
        %2888 = vmatprep.subr.mxu0 0.0
        %2889 = vmatpush1.msra.mxu0 0.0
        %2890 = vmatprep.subr.mxu0 0.0
        %2891 = vmatpush1.msra.mxu0 0.0
        %2892 = vmatprep.subr.mxu0 0.0
        %2893 = vmatpush1.msra.mxu0 0.0
        %2894 = vmatprep.subr.mxu0 0.0
        %2895 = vmatpush1.msra.mxu0 0.0
        %2896 = vmatprep.subr.mxu0 0.0
        %2897 = vmatpush1.msra.mxu0 0.0
        %2898 = vmatprep.subr.mxu0 0.0
        %2899 = vmatpush1.msra.mxu0 0.0
        %2900 = vmatprep.subr.mxu0 0.0
        %2901 = vmatpush1.msra.mxu0 0.0
        %2902 = vmatprep.subr.mxu0 0.0
        %2903 = vmatpush1.msra.mxu0 0.0
        %2904 = vmatprep.subr.mxu0 0.0
        %2905 = vmatpush1.msra.mxu0 0.0
        %2906 = vmatprep.subr.mxu0 0.0
        %2907 = vmatpush1.msra.mxu0 0.0
        %2908 = vmatprep.subr.mxu0 0.0
        %2909 = vmatpush1.msra.mxu0 0.0
        %2910 = vmatprep.subr.mxu0 0.0
        %2911 = vmatpush1.msra.mxu0 0.0
        %2912 = vmatprep.subr.mxu0 0.0
        %2913 = vmatpush1.msra.mxu0 0.0
        %2914 = vmatprep.subr.mxu0 0.0
        %2915 = vmatpush1.msra.mxu0 0.0
        %2916 = vmatprep.subr.mxu0 0.0
        %2917 = vmatpush1.msra.mxu0 0.0
        %2918 = vmatprep.subr.mxu0 0.0
        %2919 = vmatpush1.msra.mxu0 0.0
        %2920 = vmatprep.subr.mxu0 0.0
        %2921 = vmatpush1.msra.mxu0 0.0
        %2922 = vmatprep.subr.mxu0 0.0
        %2923 = vmatpush1.msra.mxu0 0.0
        %2924 = vmatprep.subr.mxu0 0.0
        %2925 = vmatpush1.msra.mxu0 0.0
        %2926 = vmatprep.subr.mxu0 0.0
        %2927 = vmatpush1.msra.mxu0 0.0
        %2928 = vmatprep.subr.mxu0 0.0
        %2929 = vmatpush1.msra.mxu0 0.0
        %2930 = vmatprep.subr.mxu0 0.0
        %2931 = vmatpush1.msra.mxu0 0.0
        %2932 = vmatprep.subr.mxu0 0.0
        %2933 = vmatpush1.msra.mxu0 0.0
        %2934 = vmatprep.subr.mxu0 0.0
        %2935 = vmatpush1.msra.mxu0 0.0
        %2936 = vmatprep.subr.mxu0 0.0
        %2937 = vmatpush1.msra.mxu0 0.0
        %2938 = vmatprep.subr.mxu0 0.0
        %2939 = vmatpush1.msra.mxu0 0.0
        %2940 = vmatprep.mubr.f32.mxu0 0.0
        %2941 = vmatmul.mubr.f32.gmra.mrb[0].mxu0 %v2871
        %v2942 = vpop.f32.mrb[0].mxu0
        %v2943 = vadd.f32 0.0, %v2942
        %v2944 = vpop.f32.mrb[0].mxu0
        %2945 = vdwg.mxu0
        %vm2946 = vcmask 257024
        %2947 = vst.msk [vmem:[%s265] sm:$0xf] %vm2946, %v1803
        %2948 = vst.msk [vmem:[%s265 + $0x4] sm:$0xf] %vm2946, %v1879
        %2949 = vst.msk [vmem:[%s265 + $0x8] sm:$0xf] %vm2946, %v1955
        %2950 = vst.msk [vmem:[%s265 + $0xc] sm:$0xf] %vm2946, %v2031
        %2951 = vst.msk [vmem:[%s265 + $0x10] sm:$0xf] %vm2946, %v2107
        %2952 = vst.msk [vmem:[%s265 + $0x14] sm:$0xf] %vm2946, %v2183
        %2953 = vst.msk [vmem:[%s265 + $0x18] sm:$0xf] %vm2946, %v2259
        %2954 = vst.msk [vmem:[%s265 + $0x1c] sm:$0xf] %vm2946, %v2335
        %2955 = vst.msk [vmem:[%s265 + $0x20] sm:$0xf] %vm2946, %v2411
        %2956 = vst.msk [vmem:[%s265 + $0x24] sm:$0xf] %vm2946, %v2487
        %2957 = vst.msk [vmem:[%s265 + $0x28] sm:$0xf] %vm2946, %v2563
        %2958 = vst.msk [vmem:[%s265 + $0x2c] sm:$0xf] %vm2946, %v2639
        %2959 = vst.msk [vmem:[%s265 + $0x30] sm:$0xf] %vm2946, %v2715
        %2960 = vst.msk [vmem:[%s265 + $0x34] sm:$0xf] %vm2946, %v2791
        %2961 = vst.msk [vmem:[%s265 + $0x38] sm:$0xf] %vm2946, %v2867
        %2962 = vst.msk [vmem:[%s265 + $0x3c] sm:$0xf] %vm2946, %v2943
        %s2963 = sand.u32 %s109, 1
        %s2964 = scalar_lea.sflag [#allocation4], %s2963
        %s2965 = sand.u32 %s109, 1
        %s2966 = smul.addr %s2965, 64
        %s2967 = scalar_lea.vmem [#allocation8], %s2966
        // Predicated region
        $region45: #{tpu_custom_call.1} parent=31 // pred_check
          %p2968 = pneg %p119
        $region46: #{tpu_custom_call.1} parent=31 // pred_check_branch
          %2970 = sbr.rel (%p2968) target = $region48
        $region47: #{tpu_custom_call.1} parent=31 // pred_region
          %s2971 = smul.u32 16, %s23
          %s2973 = ssub.s32 1024, 1024
          %2974 = vsyncadd %s2964, %s2973
          %s2975 = smul.addr %s2971, 64
          %s2976 = scalar_lea.hbm %s3, %s2975
          %s2977 = sshll.u32 %s2967, 4
          %s2978 = int_to_ptr.vmem [resolvable:$true] %s2977
          %2983 = dma.vmem_to_hbm [thread:$0]  %s2978, 1024, %s2976, %s2964, 64, 64, 4
        $region48: #{tpu_custom_call.1} parent=31 // pred_fallthru
          _
      $region32: #{tpu_custom_call.1} parent=5 // pred_fallthru
        _
      %p2984 = scmp.le.s32.totalorder 2, %s18
      // Predicated region
      $region49: #{tpu_custom_call.1} parent=5 // pred_check
        %p2985 = pneg %p2984
      $region50: #{tpu_custom_call.1} parent=5 // pred_check_branch
        %2987 = sbr.rel (%p2985) target = $region52
      $region51: #{tpu_custom_call.1} parent=5 // pred_region
        %s2988 = ssub.s32 %s18, 2
        // Predicated region
        $region53: #{tpu_custom_call.1} parent=51 // pred_check
          %p2989 = pneg %p125
        $region54: #{tpu_custom_call.1} parent=51 // pred_check_branch
          %2991 = sbr.rel (%p2989) target = $region56
        $region55: #{tpu_custom_call.1} parent=51 // pred_region
          %s2992 = sand.u32 %s110, 1
          %s2993 = scalar_lea.sflag [#allocation4], %s2992
          %s2994 = sand.u32 %s110, 1
          %s2995 = smul.addr %s2994, 64
          %s2996 = scalar_lea.vmem [#allocation8], %s2995
          %2997 = dma.done %s2993, 1024
        $region56: #{tpu_custom_call.1} parent=51 // pred_fallthru
          _
      $region52: #{tpu_custom_call.1} parent=5 // pred_fallthru
        _
    $region6: #{tpu_custom_call.1} parent=1 // loop_footer
      %s22 = sadd.s32 1, %s18
    $region7: #{tpu_custom_call.1} parent=1 // loop_footer_branch
      %17 = sbr.rel target = $region3
    $region8: #{tpu_custom_call.1} parent=1 // loop_exit
      _
    %2998 = vsyncpa [#allocation3], 1
    %s2999 = scalar_lea.sflag [#allocation3], 1
    %3000 = vsyncpa %s2999, 1
    %3001 = vsyncpa [#allocation6], 1
    %s3002 = scalar_lea.sflag [#allocation6], 1
    %3003 = vsyncpa %s3002, 1
    %3004 = vsyncpa [#allocation4], 1
    %s3005 = scalar_lea.sflag [#allocation4], 1
    %3006 = vsyncpa %s3005, 1

</llo_original>
